<compile_context>
chip_gen: v7x
topology: tpu7x:2x2x1
jax: 0.10.0
libtpu: 0.0.40
codegen_flags: <defaults>
</compile_context>

<pallas_src>
import functools

import jax
import jax.numpy as jnp
from jax import lax
from jax.experimental import pallas as pl
from jax.experimental.pallas import tpu as pltpu


# -----------------------------------------------------------------------------
# Tile-size helpers. Tiles either divide the dim or fall back to the full dim,
# so every BlockSpec satisfies the (8, 128) tiling rules at any tested shape.
# TODO(synk): dims that are not multiples of 8 should be padded by the caller;
# the full-dim fallback keeps correctness but can inflate VMEM for large dims.
# -----------------------------------------------------------------------------
def _pick_tile(dim, candidates):
    for t in candidates:
        if dim % t == 0:
            return t
    return dim


_ROW_TILES = (512, 256, 128, 64, 32, 16, 8)      # sublane-dim tiles
_LANE_TILES = (512, 256, 128)                    # lane-dim tiles (kernel A)
_LANE_TILES_SMALL = (256, 128)                   # lane-dim tiles (kernel C)
_CHUNK_TILES = (256, 128, 64, 32, 16, 8)         # attention chunk C
_WINDOW_TILES = (1024, 512, 256, 128, 64, 32, 16, 8)  # seq window per grid step


# -----------------------------------------------------------------------------
# Kernel A: tiled projection matmul with fused activation epilogue (q/k: silu)
# -----------------------------------------------------------------------------
def _proj_kernel(x_ref, w_ref, o_ref, acc_ref, *, act):
    @pl.when(pl.program_id(2) == 0)
    def _():
        acc_ref[...] = jnp.zeros_like(acc_ref)

    acc_ref[...] += jnp.dot(x_ref[...], w_ref[...],
                            preferred_element_type=jnp.float32)

    @pl.when(pl.program_id(2) == pl.num_programs(2) - 1)
    def _():
        r = acc_ref[...]
        if act == "silu":                      # fused activation epilogue
            r = r * jax.nn.sigmoid(r)
        o_ref[...] = r.astype(o_ref.dtype)


def pallas_proj(x, w, act=None):
    """x: (M, K), w: (K, N) -> (M, N) with optional fused SiLU."""
    m, kdim = x.shape
    _, n = w.shape
    tm = _pick_tile(m, _ROW_TILES)
    tn = _pick_tile(n, _LANE_TILES)
    tk = _pick_tile(kdim, _LANE_TILES)
    return pl.pallas_call(
        functools.partial(_proj_kernel, act=act),
        out_shape=jax.ShapeDtypeStruct((m, n), x.dtype),
        grid=(m // tm, n // tn, kdim // tk),
        in_specs=[pl.BlockSpec((tm, tk), lambda i, j, k: (i, k)),
                  pl.BlockSpec((tk, tn), lambda i, j, k: (k, j))],
        out_specs=pl.BlockSpec((tm, tn), lambda i, j, k: (i, j)),
        scratch_shapes=[pltpu.VMEM((tm, tn), jnp.float32)],
        compiler_params=pltpu.CompilerParams(
            dimension_semantics=("parallel", "parallel", "arbitrary")),
    )(x, w)


# -----------------------------------------------------------------------------
# Kernel B: chunked causal linear attention with fused LRPE (rotary) prologue
# -----------------------------------------------------------------------------
def _linattn_kernel(*refs, chunk, window, n_chunks, use_roll):
    if use_roll:
        q_ref, k_ref, v_ref, cos_ref, sin_ref, o_ref, state_ref = refs
        swap_ref = None
    else:
        q_ref, k_ref, v_ref, cos_ref, sin_ref, swap_ref, o_ref, state_ref = refs

    d = q_ref.shape[-1]
    half = d // 2
    c_sz, w_sz = chunk, window
    j = pl.program_id(1)
    cdtype = q_ref.dtype

    # Reset the carried kv state at the start of every sequence (per head).
    @pl.when(j == 0)
    def _():
        state_ref[...] = jnp.zeros_like(state_ref)

    # Causal mask for the intra-chunk (diagonal) block, built once per grid
    # step (hoisted out of the chunk loop).
    row = lax.broadcasted_iota(jnp.int32, (c_sz, c_sz), 0)
    col = lax.broadcasted_iota(jnp.int32, (c_sz, c_sz), 1)
    causal = col <= row

    def rotate(xf, cos, sin):
        # LRPE rotate-half rotary.  On lane-aligned head dims the pair swizzle
        # rides the (otherwise idle) XLU; otherwise a tiny permutation matmul.
        if use_roll:
            xr = pltpu.roll(xf, shift=half, axis=1)
        else:
            xr = jnp.dot(xf.astype(cdtype), swap_ref[...],
                         preferred_element_type=jnp.float32)
        return xf * cos + xr * sin

    # Several chunks per grid step amortise the per-grid-step overhead.
    for ci in range(n_chunks):                    # static unroll (small count)
        r0 = ci * c_sz
        pos0 = pl.multiple_of(j * w_sz + r0, c_sz)
        cosb = cos_ref[pl.ds(pos0, c_sz), :]       # (C, D) f32, VMEM-resident
        sinb = sin_ref[pl.ds(pos0, c_sz), :]

        qf = q_ref[pl.ds(r0, c_sz), :].astype(jnp.float32)
        kf = k_ref[pl.ds(r0, c_sz), :].astype(jnp.float32)
        vb = v_ref[pl.ds(r0, c_sz), :]

        q_rot = rotate(qf, cosb, sinb).astype(cdtype)
        k_rot = rotate(kf, cosb, sinb).astype(cdtype)

        # ---- inter-chunk term: q @ S, S = sum over previous chunks of k^T v
        state = state_ref[...]                     # (D, D) f32 carried state
        inter = jnp.dot(q_rot, state.astype(cdtype),
                        preferred_element_type=jnp.float32)

        # ---- intra-chunk term: causally masked diagonal (C, C) block only
        energy = lax.dot_general(q_rot, k_rot, (((1,), (1,)), ((), ())),
                                 preferred_element_type=jnp.float32)
        energy = jnp.where(causal, energy, 0.0)
        intra = jnp.dot(energy.astype(vb.dtype), vb,
                        preferred_element_type=jnp.float32)

        o_ref[pl.ds(r0, c_sz), :] = (inter + intra).astype(o_ref.dtype)

        # ---- carry the state to the next chunk: S += k^T @ v
        state_ref[...] = state + lax.dot_general(
            k_rot, vb, (((0,), (0,)), ((), ())),
            preferred_element_type=jnp.float32)


def pallas_linear_attention(q, k, v, batch, seq_len, num_heads, head_dim,
                            base=10000.0):
    """q, k, v: (batch*seq, embed) -> (batch*seq, embed).

    The head split is handled by BlockSpecs when head_dim is lane-aligned
    (no reshape/transpose HBM round trips); otherwise a per-head fallback
    layout is used so every block stays (8, 128)-legal.
    """
    bn, e = q.shape
    n, h, d = seq_len, num_heads, head_dim
    lane_aligned = (d % 128) == 0

    w = _pick_tile(n, _WINDOW_TILES)               # sequence window / grid step
    c = min(w, _pick_tile(n, _CHUNK_TILES))        # intra-chunk size
    n_chunks = w // c
    nw = n // w

    # LRPE tables (f32), VMEM-resident for the whole kernel (DMA'd once).
    # TODO(synk): xmixers Lrpe source not provided; standard rotate-half rotary
    # with theta_j = base**(-2j/D) (lrpe_type=1, offset=0) is assumed.
    half = d // 2
    theta = base ** (-2.0 / d * jnp.arange(half, dtype=jnp.float32))
    angle = jnp.arange(n, dtype=jnp.float32)[:, None] * theta[None, :]
    cos_t = jnp.concatenate([jnp.cos(angle), jnp.cos(angle)], axis=-1)
    sin_half = jnp.sin(angle)
    tbl_spec = pl.BlockSpec((n, d), lambda i, j: (0, 0))

    if lane_aligned:
        # Head split folded into the index_map: blocks are (w, d) column
        # stripes of the (b*n, e) projection outputs / attention output.
        arrays = (q, k, v)
        out_shape = jax.ShapeDtypeStruct((bn, e), q.dtype)

        def qkv_map(i, j):
            return ((i // h) * nw + j, i % h)

        # roll(x, d/2) = [x2, x1]; fold the rotate-half sign into sin table.
        sin_t = jnp.concatenate([-sin_half, sin_half], axis=-1)
        extra_in, extra_specs = (), ()
    else:
        # Lane-unaligned head_dim: per-head layout (one transpose each way)
        # and the rotate-half permutation as a tiny MXU matmul.
        # TODO(synk): for 64-dim heads, grouping two heads per 128-lane block
        # would keep stores lane-dense and drop this transpose as well.
        def to_heads(t):
            return (t.reshape(batch, n, h, d).transpose(0, 2, 1, 3)
                     .reshape(batch * h * n, d))

        arrays = tuple(map(to_heads, (q, k, v)))
        out_shape = jax.ShapeDtypeStruct((batch * h * n, d), q.dtype)

        def qkv_map(i, j):
            return (i * nw + j, 0)

        sin_t = jnp.concatenate([sin_half, sin_half], axis=-1)
        idx = jnp.arange(half)
        swap = jnp.zeros((d, d), q.dtype)
        swap = swap.at[idx + half, idx].set(-1.0)   # lower-left block = -I
        swap = swap.at[idx, idx + half].set(1.0)    # upper-right block = +I
        extra_in = (swap,)
        extra_specs = (pl.BlockSpec((d, d), lambda i, j: (0, 0)),)

    qkv_spec = pl.BlockSpec((w, d), qkv_map)

    kernel = functools.partial(_linattn_kernel, chunk=c, window=w,
                               n_chunks=n_chunks, use_roll=lane_aligned)

    out = pl.pallas_call(
        kernel,
        out_shape=out_shape,
        grid=(batch * h, nw),
        in_specs=[qkv_spec, qkv_spec, qkv_spec, tbl_spec, tbl_spec,
                  *extra_specs],
        out_specs=qkv_spec,
        scratch_shapes=[pltpu.VMEM((d, d), jnp.float32)],
        compiler_params=pltpu.CompilerParams(
            dimension_semantics=("parallel", "arbitrary")),
    )(*arrays, cos_t, sin_t, *extra_in)

    if not lane_aligned:
        out = (out.reshape(batch, h, n, d).transpose(0, 2, 1, 3)
                  .reshape(bn, e))
    return out


# -----------------------------------------------------------------------------
# Kernel C: fused out_proj + two-layer output gate + sigmoid*mul + layernorm
# (reference order: layernorm( out_proj(attn) * sigmoid(out_gate(x)) ) )
# -----------------------------------------------------------------------------
def _out_gate_norm_kernel(attn_ref, x_ref, wo_ref, wg1_ref, wg2_ref,
                          lnw_ref, lnb_ref, o_ref, acc_o, acc_g, *, eps):
    kstep = pl.program_id(1)

    @pl.when(kstep == 0)
    def _():
        acc_o[...] = jnp.zeros_like(acc_o)
        acc_g[...] = jnp.zeros_like(acc_g)

    acc_o[...] += jnp.dot(attn_ref[...], wo_ref[...],
                          preferred_element_type=jnp.float32)
    acc_g[...] += jnp.dot(x_ref[...], wg1_ref[...],
                          preferred_element_type=jnp.float32)

    @pl.when(kstep == pl.num_programs(1) - 1)
    def _():
        gate = jax.nn.sigmoid(
            jnp.dot(acc_g[...].astype(wg2_ref.dtype), wg2_ref[...],
                    preferred_element_type=jnp.float32))
        y = acc_o[...] * gate
        mean = jnp.mean(y, axis=-1, keepdims=True)
        var = jnp.mean(jnp.square(y - mean), axis=-1, keepdims=True)
        y = (y - mean) * lax.rsqrt(var + eps)
        y = y * lnw_ref[...] + lnb_ref[...]
        o_ref[...] = y.astype(o_ref.dtype)


def pallas_out_gate_norm(attn_out, x, wo, wg1, wg2, ln_w, ln_b, eps=1e-5):
    m, e = attn_out.shape
    dh = wg1.shape[1]
    # Modest tiles keep the full-E accumulator / weight blocks inside the
    # default scoped-VMEM budget on all generations (incl. v7x's 64 MiB).
    tm = _pick_tile(m, (128, 64, 32, 16, 8))
    tk = _pick_tile(e, _LANE_TILES_SMALL)
    lnw2 = ln_w.reshape(1, e).astype(jnp.float32)
    lnb2 = ln_b.reshape(1, e).astype(jnp.float32)
    return pl.pallas_call(
        functools.partial(_out_gate_norm_kernel, eps=eps),
        out_shape=jax.ShapeDtypeStruct((m, e), attn_out.dtype),
        grid=(m // tm, e // tk),
        in_specs=[pl.BlockSpec((tm, tk), lambda i, k: (i, k)),   # attn_out
                  pl.BlockSpec((tm, tk), lambda i, k: (i, k)),   # x
                  pl.BlockSpec((tk, e), lambda i, k: (k, 0)),    # wo
                  pl.BlockSpec((tk, dh), lambda i, k: (k, 0)),   # out_gate[0]
                  pl.BlockSpec((dh, e), lambda i, k: (0, 0)),    # out_gate[1]
                  pl.BlockSpec((1, e), lambda i, k: (0, 0)),     # ln weight
                  pl.BlockSpec((1, e), lambda i, k: (0, 0))],    # ln bias
        out_specs=pl.BlockSpec((tm, e), lambda i, k: (i, 0)),    # lane-dense
        scratch_shapes=[pltpu.VMEM((tm, e), jnp.float32),
                        pltpu.VMEM((tm, dh), jnp.float32)],
        compiler_params=pltpu.CompilerParams(
            dimension_semantics=("parallel", "arbitrary")),
    )(attn_out, x, wo, wg1, wg2, lnw2, lnb2)


# -----------------------------------------------------------------------------
# Parameters (deterministic init, PyTorch Linear default uniform bound)
# -----------------------------------------------------------------------------
def init_params(key, embed_dim, num_heads):
    head_dim = embed_dim // num_heads

    def lin(k, fan_in, fan_out):
        bound = 1.0 / (fan_in ** 0.5)
        # stored transposed relative to torch: (in, out), so y = x @ W
        return jax.random.uniform(k, (fan_in, fan_out), jnp.float32,
                                  -bound, bound)

    ks = jax.random.split(key, 6)
    return {
        "wq": lin(ks[0], embed_dim, embed_dim),
        "wk": lin(ks[1], embed_dim, embed_dim),
        "wv": lin(ks[2], embed_dim, embed_dim),
        "wo": lin(ks[3], embed_dim, embed_dim),
        "wg1": lin(ks[4], embed_dim, head_dim),   # out_gate[0]
        "wg2": lin(ks[5], head_dim, embed_dim),   # out_gate[1]
        "ln_w": jnp.ones((embed_dim,), jnp.float32),
        "ln_b": jnp.zeros((embed_dim,), jnp.float32),
    }


# -----------------------------------------------------------------------------
# Forward
# -----------------------------------------------------------------------------
def linear_attention_forward(x, params, num_heads):
    b, n, e = x.shape
    h = num_heads
    d = e // h
    assert e == h * d
    dt = x.dtype
    x2d = x.reshape(b * n, e)

    # Weights ride the MXU in the activation dtype (bf16 activations -> halved
    # weight DMA + fast MXU path); accumulation stays f32 inside the kernels.
    wq, wk, wv, wo = (params[name].astype(dt)
                      for name in ("wq", "wk", "wv", "wo"))
    wg1 = params["wg1"].astype(dt)
    wg2 = params["wg2"].astype(dt)

    # Projections with fused SiLU epilogue on q/k (matches act(q_proj(x))).
    q = pallas_proj(x2d, wq, act="silu")
    k = pallas_proj(x2d, wk, act="silu")
    v = pallas_proj(x2d, wv, act=None)

    # Chunked causal linear-attention core with fused LRPE (hot path).
    attn = pallas_linear_attention(q, k, v, b, n, h, d)

    # Fused out_proj + sigmoid(out_gate(x)) multiply + layernorm.
    y = pallas_out_gate_norm(attn, x2d, wo, wg1, wg2,
                             params["ln_w"], params["ln_b"])
    return y.reshape(b, n, e)


# -----------------------------------------------------------------------------
if __name__ == "__main__":
    B, N, E, H = 2, 8, 32, 4  # batch, seq, embed_dim, num_heads (head_dim=8)

    key = jax.random.PRNGKey(0)
    kx, kp = jax.random.split(key)
    x = jax.random.normal(kx, (B, N, E), dtype=jnp.float32)
    params = init_params(kp, E, H)

    fwd = jax.jit(functools.partial(linear_attention_forward, num_heads=H))
    out = fwd(x, params)
    jax.block_until_ready(out)
    assert out.shape == (B, N, E)
    print("KERNEL_OK")
</pallas_src>

<mosaic_0001>
module attributes {stable_mosaic.version = 11 : i64} {
  func.func @_proj_kernel(%arg0: i32, %arg1: i32, %arg2: i32, %arg3: memref<16x32xf32, #tpu.memory_space<vmem>>, %arg4: memref<32x32xf32, #tpu.memory_space<vmem>>, %arg5: memref<16x32xf32, #tpu.memory_space<vmem>>, %arg6: memref<16x32xf32, #tpu.memory_space<vmem>>) attributes {dimension_semantics = [#tpu.dimension_semantics<parallel>, #tpu.dimension_semantics<parallel>, #tpu.dimension_semantics<arbitrary>], iteration_bounds = array<i64: 1, 1, 1>, scalar_prefetch = 0 : i64, scratch_operands = 1 : i64, tpu.core_type = #tpu.core_type<tc>, window_params = [{transform_indices = @transform_0, window_bounds = array<i64: 16, 32>}, {transform_indices = @transform_1, window_bounds = array<i64: 32, 32>}, {transform_indices = @transform_2, window_bounds = array<i64: 16, 32>}]} {
    %c0_i32 = arith.constant 0 : i32
    %0 = arith.cmpi eq, %arg2, %c0_i32 : i32
    %1 = arith.extui %0 : i1 to i32
    %c0_i32_0 = arith.constant 0 : i32
    %2 = arith.cmpi ne, %1, %c0_i32_0 : i32
    scf.if %2 {
      %cst_10 = arith.constant 0.000000e+00 : f32
      %12 = vector.broadcast %cst_10 : f32 to vector<16x32xf32>
      %c0_11 = arith.constant 0 : index
      %c0_12 = arith.constant 0 : index
      %13 = vector.load %arg6[%c0_11, %c0_12] : memref<16x32xf32, #tpu.memory_space<vmem>>, vector<16x32xf32>
      tpu.vector_store %arg6[%c0_11, %c0_12], %12 {strides = array<i32>} : memref<16x32xf32, #tpu.memory_space<vmem>>, vector<16x32xf32>,
    } else {
    }
    %c0 = arith.constant 0 : index
    %c0_1 = arith.constant 0 : index
    %3 = vector.load %arg6[%c0, %c0_1] : memref<16x32xf32, #tpu.memory_space<vmem>>, vector<16x32xf32>
    %c0_2 = arith.constant 0 : index
    %c0_3 = arith.constant 0 : index
    %4 = vector.load %arg3[%c0_2, %c0_3] : memref<16x32xf32, #tpu.memory_space<vmem>>, vector<16x32xf32>
    %c0_4 = arith.constant 0 : index
    %c0_5 = arith.constant 0 : index
    %5 = vector.load %arg4[%c0_4, %c0_5] : memref<32x32xf32, #tpu.memory_space<vmem>>, vector<32x32xf32>
    %cst = arith.constant dense<0.000000e+00> : vector<16x32xf32>
    %6 = tpu.matmul %4, %5, %cst {dimension_numbers = #tpu.dot_dimension_numbers<[1], [0], [0], [1], [0, 0, 1, 1], [], []>} : vector<16x32xf32>, vector<32x32xf32>, vector<16x32xf32> -> vector<16x32xf32>
    %7 = arith.addf %3, %6 : vector<16x32xf32>
    %c0_6 = arith.constant 0 : index
    %c0_7 = arith.constant 0 : index
    %8 = vector.load %arg6[%c0_6, %c0_7] : memref<16x32xf32, #tpu.memory_space<vmem>>, vector<16x32xf32>
    tpu.vector_store %arg6[%c0_6, %c0_7], %7 {strides = array<i32>} : memref<16x32xf32, #tpu.memory_space<vmem>>, vector<16x32xf32>,
    %c0_i32_8 = arith.constant 0 : i32
    %9 = arith.cmpi eq, %arg2, %c0_i32_8 : i32
    %10 = arith.extui %9 : i1 to i32
    %c0_i32_9 = arith.constant 0 : i32
    %11 = arith.cmpi ne, %10, %c0_i32_9 : i32
    scf.if %11 {
      %c0_10 = arith.constant 0 : index
      %c0_11 = arith.constant 0 : index
      %12 = vector.load %arg6[%c0_10, %c0_11] : memref<16x32xf32, #tpu.memory_space<vmem>>, vector<16x32xf32>
      %13 = arith.negf %12 : vector<16x32xf32>
      %14 = math.exp %13 : vector<16x32xf32>
      %cst_12 = arith.constant 1.000000e+00 : f32
      %15 = vector.broadcast %cst_12 : f32 to vector<16x32xf32>
      %16 = arith.addf %15, %14 : vector<16x32xf32>
      %17 = arith.divf %15, %16 : vector<16x32xf32>
      %18 = arith.mulf %12, %17 : vector<16x32xf32>
      %c0_13 = arith.constant 0 : index
      %c0_14 = arith.constant 0 : index
      %19 = vector.load %arg5[%c0_13, %c0_14] : memref<16x32xf32, #tpu.memory_space<vmem>>, vector<16x32xf32>
      tpu.vector_store %arg5[%c0_13, %c0_14], %18 {strides = array<i32>} : memref<16x32xf32, #tpu.memory_space<vmem>>, vector<16x32xf32>,
    } else {
    }
    return
  }
  func.func @transform_0(%arg0: i32, %arg1: i32, %arg2: i32) -> (i32, i32) {
    %c0_i32 = arith.constant 0 : i32
    return %arg0, %arg2 : i32, i32
  }
  func.func @transform_1(%arg0: i32, %arg1: i32, %arg2: i32) -> (i32, i32) {
    %c0_i32 = arith.constant 0 : i32
    return %arg2, %arg1 : i32, i32
  }
  func.func @transform_2(%arg0: i32, %arg1: i32, %arg2: i32) -> (i32, i32) {
    %c0_i32 = arith.constant 0 : i32
    return %arg0, %arg1 : i32, i32
  }
}

module attributes {stable_mosaic.version = 11 : i64} {
  func.func @_proj_kernel(%arg0: i32, %arg1: i32, %arg2: i32, %arg3: memref<16x32xf32, #tpu.memory_space<vmem>>, %arg4: memref<32x32xf32, #tpu.memory_space<vmem>>, %arg5: memref<16x32xf32, #tpu.memory_space<vmem>>, %arg6: memref<16x32xf32, #tpu.memory_space<vmem>>) attributes {dimension_semantics = [#tpu.dimension_semantics<parallel>, #tpu.dimension_semantics<parallel>, #tpu.dimension_semantics<arbitrary>], iteration_bounds = array<i64: 1, 1, 1>, scalar_prefetch = 0 : i64, scratch_operands = 1 : i64, tpu.core_type = #tpu.core_type<tc>, window_params = [{transform_indices = @transform_0, window_bounds = array<i64: 16, 32>}, {transform_indices = @transform_1, window_bounds = array<i64: 32, 32>}, {transform_indices = @transform_2, window_bounds = array<i64: 16, 32>}]} {
    %c0_i32 = arith.constant 0 : i32
    %0 = arith.cmpi eq, %arg2, %c0_i32 : i32
    %1 = arith.extui %0 : i1 to i32
    %c0_i32_0 = arith.constant 0 : i32
    %2 = arith.cmpi ne, %1, %c0_i32_0 : i32
    scf.if %2 {
      %cst_10 = arith.constant 0.000000e+00 : f32
      %12 = vector.broadcast %cst_10 : f32 to vector<16x32xf32>
      %c0_11 = arith.constant 0 : index
      %c0_12 = arith.constant 0 : index
      %13 = vector.load %arg6[%c0_11, %c0_12] : memref<16x32xf32, #tpu.memory_space<vmem>>, vector<16x32xf32>
      tpu.vector_store %arg6[%c0_11, %c0_12], %12 {strides = array<i32>} : memref<16x32xf32, #tpu.memory_space<vmem>>, vector<16x32xf32>,
    } else {
    }
    %c0 = arith.constant 0 : index
    %c0_1 = arith.constant 0 : index
    %3 = vector.load %arg6[%c0, %c0_1] : memref<16x32xf32, #tpu.memory_space<vmem>>, vector<16x32xf32>
    %c0_2 = arith.constant 0 : index
    %c0_3 = arith.constant 0 : index
    %4 = vector.load %arg3[%c0_2, %c0_3] : memref<16x32xf32, #tpu.memory_space<vmem>>, vector<16x32xf32>
    %c0_4 = arith.constant 0 : index
    %c0_5 = arith.constant 0 : index
    %5 = vector.load %arg4[%c0_4, %c0_5] : memref<32x32xf32, #tpu.memory_space<vmem>>, vector<32x32xf32>
    %cst = arith.constant dense<0.000000e+00> : vector<16x32xf32>
    %6 = tpu.matmul %4, %5, %cst {dimension_numbers = #tpu.dot_dimension_numbers<[1], [0], [0], [1], [0, 0, 1, 1], [], []>} : vector<16x32xf32>, vector<32x32xf32>, vector<16x32xf32> -> vector<16x32xf32>
    %7 = arith.addf %3, %6 : vector<16x32xf32>
    %c0_6 = arith.constant 0 : index
    %c0_7 = arith.constant 0 : index
    %8 = vector.load %arg6[%c0_6, %c0_7] : memref<16x32xf32, #tpu.memory_space<vmem>>, vector<16x32xf32>
    tpu.vector_store %arg6[%c0_6, %c0_7], %7 {strides = array<i32>} : memref<16x32xf32, #tpu.memory_space<vmem>>, vector<16x32xf32>,
    %c0_i32_8 = arith.constant 0 : i32
    %9 = arith.cmpi eq, %arg2, %c0_i32_8 : i32
    %10 = arith.extui %9 : i1 to i32
    %c0_i32_9 = arith.constant 0 : i32
    %11 = arith.cmpi ne, %10, %c0_i32_9 : i32
    scf.if %11 {
      %c0_10 = arith.constant 0 : index
      %c0_11 = arith.constant 0 : index
      %12 = vector.load %arg6[%c0_10, %c0_11] : memref<16x32xf32, #tpu.memory_space<vmem>>, vector<16x32xf32>
      %13 = arith.negf %12 : vector<16x32xf32>
      %14 = math.exp %13 : vector<16x32xf32>
      %cst_12 = arith.constant 1.000000e+00 : f32
      %15 = vector.broadcast %cst_12 : f32 to vector<16x32xf32>
      %16 = arith.addf %15, %14 : vector<16x32xf32>
      %17 = arith.divf %15, %16 : vector<16x32xf32>
      %18 = arith.mulf %12, %17 : vector<16x32xf32>
      %c0_13 = arith.constant 0 : index
      %c0_14 = arith.constant 0 : index
      %19 = vector.load %arg5[%c0_13, %c0_14] : memref<16x32xf32, #tpu.memory_space<vmem>>, vector<16x32xf32>
      tpu.vector_store %arg5[%c0_13, %c0_14], %18 {strides = array<i32>} : memref<16x32xf32, #tpu.memory_space<vmem>>, vector<16x32xf32>,
    } else {
    }
    return
  }
  func.func @transform_0(%arg0: i32, %arg1: i32, %arg2: i32) -> (i32, i32) {
    %c0_i32 = arith.constant 0 : i32
    return %arg0, %arg2 : i32, i32
  }
  func.func @transform_1(%arg0: i32, %arg1: i32, %arg2: i32) -> (i32, i32) {
    %c0_i32 = arith.constant 0 : i32
    return %arg2, %arg1 : i32, i32
  }
  func.func @transform_2(%arg0: i32, %arg1: i32, %arg2: i32) -> (i32, i32) {
    %c0_i32 = arith.constant 0 : i32
    return %arg0, %arg1 : i32, i32
  }
}

module attributes {stable_mosaic.version = 11 : i64} {
  func.func @_proj_kernel(%arg0: i32, %arg1: i32, %arg2: i32, %arg3: memref<16x32xf32, #tpu.memory_space<vmem>>, %arg4: memref<32x32xf32, #tpu.memory_space<vmem>>, %arg5: memref<16x32xf32, #tpu.memory_space<vmem>>, %arg6: memref<16x32xf32, #tpu.memory_space<vmem>>) attributes {dimension_semantics = [#tpu.dimension_semantics<parallel>, #tpu.dimension_semantics<parallel>, #tpu.dimension_semantics<arbitrary>], iteration_bounds = array<i64: 1, 1, 1>, scalar_prefetch = 0 : i64, scratch_operands = 1 : i64, tpu.core_type = #tpu.core_type<tc>, window_params = [{transform_indices = @transform_0, window_bounds = array<i64: 16, 32>}, {transform_indices = @transform_1, window_bounds = array<i64: 32, 32>}, {transform_indices = @transform_2, window_bounds = array<i64: 16, 32>}]} {
    %c0_i32 = arith.constant 0 : i32
    %0 = arith.cmpi eq, %arg2, %c0_i32 : i32
    %1 = arith.extui %0 : i1 to i32
    %c0_i32_0 = arith.constant 0 : i32
    %2 = arith.cmpi ne, %1, %c0_i32_0 : i32
    scf.if %2 {
      %cst_10 = arith.constant 0.000000e+00 : f32
      %12 = vector.broadcast %cst_10 : f32 to vector<16x32xf32>
      %c0_11 = arith.constant 0 : index
      %c0_12 = arith.constant 0 : index
      %13 = vector.load %arg6[%c0_11, %c0_12] : memref<16x32xf32, #tpu.memory_space<vmem>>, vector<16x32xf32>
      tpu.vector_store %arg6[%c0_11, %c0_12], %12 {strides = array<i32>} : memref<16x32xf32, #tpu.memory_space<vmem>>, vector<16x32xf32>,
    } else {
    }
    %c0 = arith.constant 0 : index
    %c0_1 = arith.constant 0 : index
    %3 = vector.load %arg6[%c0, %c0_1] : memref<16x32xf32, #tpu.memory_space<vmem>>, vector<16x32xf32>
    %c0_2 = arith.constant 0 : index
    %c0_3 = arith.constant 0 : index
    %4 = vector.load %arg3[%c0_2, %c0_3] : memref<16x32xf32, #tpu.memory_space<vmem>>, vector<16x32xf32>
    %c0_4 = arith.constant 0 : index
    %c0_5 = arith.constant 0 : index
    %5 = vector.load %arg4[%c0_4, %c0_5] : memref<32x32xf32, #tpu.memory_space<vmem>>, vector<32x32xf32>
    %cst = arith.constant dense<0.000000e+00> : vector<16x32xf32>
    %6 = tpu.matmul %4, %5, %cst {dimension_numbers = #tpu.dot_dimension_numbers<[1], [0], [0], [1], [0, 0, 1, 1], [], []>} : vector<16x32xf32>, vector<32x32xf32>, vector<16x32xf32> -> vector<16x32xf32>
    %7 = arith.addf %3, %6 : vector<16x32xf32>
    %c0_6 = arith.constant 0 : index
    %c0_7 = arith.constant 0 : index
    %8 = vector.load %arg6[%c0_6, %c0_7] : memref<16x32xf32, #tpu.memory_space<vmem>>, vector<16x32xf32>
    tpu.vector_store %arg6[%c0_6, %c0_7], %7 {strides = array<i32>} : memref<16x32xf32, #tpu.memory_space<vmem>>, vector<16x32xf32>,
    %c0_i32_8 = arith.constant 0 : i32
    %9 = arith.cmpi eq, %arg2, %c0_i32_8 : i32
    %10 = arith.extui %9 : i1 to i32
    %c0_i32_9 = arith.constant 0 : i32
    %11 = arith.cmpi ne, %10, %c0_i32_9 : i32
    scf.if %11 {
      %c0_10 = arith.constant 0 : index
      %c0_11 = arith.constant 0 : index
      %12 = vector.load %arg6[%c0_10, %c0_11] : memref<16x32xf32, #tpu.memory_space<vmem>>, vector<16x32xf32>
      %c0_12 = arith.constant 0 : index
      %c0_13 = arith.constant 0 : index
      %13 = vector.load %arg5[%c0_12, %c0_13] : memref<16x32xf32, #tpu.memory_space<vmem>>, vector<16x32xf32>
      tpu.vector_store %arg5[%c0_12, %c0_13], %12 {strides = array<i32>} : memref<16x32xf32, #tpu.memory_space<vmem>>, vector<16x32xf32>,
    } else {
    }
    return
  }
  func.func @transform_0(%arg0: i32, %arg1: i32, %arg2: i32) -> (i32, i32) {
    %c0_i32 = arith.constant 0 : i32
    return %arg0, %arg2 : i32, i32
  }
  func.func @transform_1(%arg0: i32, %arg1: i32, %arg2: i32) -> (i32, i32) {
    %c0_i32 = arith.constant 0 : i32
    return %arg2, %arg1 : i32, i32
  }
  func.func @transform_2(%arg0: i32, %arg1: i32, %arg2: i32) -> (i32, i32) {
    %c0_i32 = arith.constant 0 : i32
    return %arg0, %arg1 : i32, i32
  }
}

module attributes {stable_mosaic.version = 11 : i64} {
  func.func @_linattn_kernel(%arg0: i32, %arg1: i32, %arg2: memref<8x8xf32, #tpu.memory_space<vmem>>, %arg3: memref<8x8xf32, #tpu.memory_space<vmem>>, %arg4: memref<8x8xf32, #tpu.memory_space<vmem>>, %arg5: memref<8x8xf32, #tpu.memory_space<vmem>>, %arg6: memref<8x8xf32, #tpu.memory_space<vmem>>, %arg7: memref<8x8xf32, #tpu.memory_space<vmem>>, %arg8: memref<8x8xf32, #tpu.memory_space<vmem>>, %arg9: memref<8x8xf32, #tpu.memory_space<vmem>>) attributes {dimension_semantics = [#tpu.dimension_semantics<parallel>, #tpu.dimension_semantics<arbitrary>], iteration_bounds = array<i64: 8, 1>, scalar_prefetch = 0 : i64, scratch_operands = 1 : i64, tpu.core_type = #tpu.core_type<tc>, window_params = [{transform_indices = @transform_0, window_bounds = array<i64: 8, 8>}, {transform_indices = @transform_1, window_bounds = array<i64: 8, 8>}, {transform_indices = @transform_2, window_bounds = array<i64: 8, 8>}, {pipeline_mode = #tpu.pipeline_mode<synchronous>, transform_indices = @transform_3, window_bounds = array<i64: 8, 8>}, {pipeline_mode = #tpu.pipeline_mode<synchronous>, transform_indices = @transform_4, window_bounds = array<i64: 8, 8>}, {pipeline_mode = #tpu.pipeline_mode<synchronous>, transform_indices = @transform_5, window_bounds = array<i64: 8, 8>}, {transform_indices = @transform_6, window_bounds = array<i64: 8, 8>}]} {
    %c0_i32 = arith.constant 0 : i32
    %0 = arith.cmpi eq, %arg1, %c0_i32 : i32
    %1 = arith.extui %0 : i1 to i32
    %c0_i32_0 = arith.constant 0 : i32
    %2 = arith.cmpi ne, %1, %c0_i32_0 : i32
    scf.if %2 {
      %cst_25 = arith.constant 0.000000e+00 : f32
      %37 = vector.broadcast %cst_25 : f32 to vector<8x8xf32>
      %c0_26 = arith.constant 0 : index
      %c0_27 = arith.constant 0 : index
      %38 = vector.load %arg9[%c0_26, %c0_27] : memref<8x8xf32, #tpu.memory_space<vmem>>, vector<8x8xf32>
      tpu.vector_store %arg9[%c0_26, %c0_27], %37 {strides = array<i32>} : memref<8x8xf32, #tpu.memory_space<vmem>>, vector<8x8xf32>,
    } else {
    }
    %3 = tpu.iota {dimensions = array<i32: 0>} : vector<8x8xi32>
    %4 = tpu.iota {dimensions = array<i32: 1>} : vector<8x8xi32>
    %5 = arith.cmpi sle, %4, %3 : vector<8x8xi32>
    %c8_i32 = arith.constant 8 : i32
    %6 = arith.muli %arg1, %c8_i32 : i32
    %c0_i32_1 = arith.constant 0 : i32
    %7 = arith.addi %6, %c0_i32_1 : i32
    %8 = tpu.assume_multiple %7, 8 : i32
    %9 = arith.index_cast %8 : i32 to index
    %c0 = arith.constant 0 : index
    %10 = vector.load %arg5[%9, %c0] : memref<8x8xf32, #tpu.memory_space<vmem>>, vector<8x8xf32>
    %11 = arith.index_cast %8 : i32 to index
    %c0_2 = arith.constant 0 : index
    %12 = vector.load %arg6[%11, %c0_2] : memref<8x8xf32, #tpu.memory_space<vmem>>, vector<8x8xf32>
    %c0_3 = arith.constant 0 : index
    %c0_4 = arith.constant 0 : index
    %13 = vector.load %arg2[%c0_3, %c0_4] : memref<8x8xf32, #tpu.memory_space<vmem>>, vector<8x8xf32>
    %c0_5 = arith.constant 0 : index
    %c0_6 = arith.constant 0 : index
    %14 = vector.load %arg3[%c0_5, %c0_6] : memref<8x8xf32, #tpu.memory_space<vmem>>, vector<8x8xf32>
    %c0_7 = arith.constant 0 : index
    %c0_8 = arith.constant 0 : index
    %15 = vector.load %arg4[%c0_7, %c0_8] : memref<8x8xf32, #tpu.memory_space<vmem>>, vector<8x8xf32>
    %c0_9 = arith.constant 0 : index
    %c0_10 = arith.constant 0 : index
    %16 = vector.load %arg7[%c0_9, %c0_10] : memref<8x8xf32, #tpu.memory_space<vmem>>, vector<8x8xf32>
    %cst = arith.constant dense<0.000000e+00> : vector<8x8xf32>
    %17 = tpu.matmul %13, %16, %cst {dimension_numbers = #tpu.dot_dimension_numbers<[1], [0], [0], [1], [0, 0, 1, 1], [], []>} : vector<8x8xf32>, vector<8x8xf32>, vector<8x8xf32> -> vector<8x8xf32>
    %18 = arith.mulf %13, %10 : vector<8x8xf32>
    %19 = arith.mulf %17, %12 : vector<8x8xf32>
    %20 = arith.addf %18, %19 : vector<8x8xf32>
    %c0_11 = arith.constant 0 : index
    %c0_12 = arith.constant 0 : index
    %21 = vector.load %arg7[%c0_11, %c0_12] : memref<8x8xf32, #tpu.memory_space<vmem>>, vector<8x8xf32>
    %cst_13 = arith.constant dense<0.000000e+00> : vector<8x8xf32>
    %22 = tpu.matmul %14, %21, %cst_13 {dimension_numbers = #tpu.dot_dimension_numbers<[1], [0], [0], [1], [0, 0, 1, 1], [], []>} : vector<8x8xf32>, vector<8x8xf32>, vector<8x8xf32> -> vector<8x8xf32>
    %23 = arith.mulf %14, %10 : vector<8x8xf32>
    %24 = arith.mulf %22, %12 : vector<8x8xf32>
    %25 = arith.addf %23, %24 : vector<8x8xf32>
    %c0_14 = arith.constant 0 : index
    %c0_15 = arith.constant 0 : index
    %26 = vector.load %arg9[%c0_14, %c0_15] : memref<8x8xf32, #tpu.memory_space<vmem>>, vector<8x8xf32>
    %cst_16 = arith.constant dense<0.000000e+00> : vector<8x8xf32>
    %27 = tpu.matmul %20, %26, %cst_16 {dimension_numbers = #tpu.dot_dimension_numbers<[1], [0], [0], [1], [0, 0, 1, 1], [], []>} : vector<8x8xf32>, vector<8x8xf32>, vector<8x8xf32> -> vector<8x8xf32>
    %cst_17 = arith.constant dense<0.000000e+00> : vector<8x8xf32>
    %28 = tpu.matmul %20, %25, %cst_17 {dimension_numbers = #tpu.dot_dimension_numbers<[1], [1], [0], [0], [0, 0, 1, 0], [], []>} : vector<8x8xf32>, vector<8x8xf32>, vector<8x8xf32> -> vector<8x8xf32>
    %cst_18 = arith.constant 0.000000e+00 : f32
    %29 = vector.broadcast %cst_18 : f32 to vector<8x8xf32>
    %30 = arith.select %5, %28, %29 : vector<8x8xi1>, vector<8x8xf32>
    %cst_19 = arith.constant dense<0.000000e+00> : vector<8x8xf32>
    %31 = tpu.matmul %30, %15, %cst_19 {dimension_numbers = #tpu.dot_dimension_numbers<[1], [0], [0], [1], [0, 0, 1, 1], [], []>} : vector<8x8xf32>, vector<8x8xf32>, vector<8x8xf32> -> vector<8x8xf32>
    %32 = arith.addf %27, %31 : vector<8x8xf32>
    %c0_20 = arith.constant 0 : index
    %c0_21 = arith.constant 0 : index
    %33 = vector.load %arg8[%c0_20, %c0_21] : memref<8x8xf32, #tpu.memory_space<vmem>>, vector<8x8xf32>
    tpu.vector_store %arg8[%c0_20, %c0_21], %32 {strides = array<i32>} : memref<8x8xf32, #tpu.memory_space<vmem>>, vector<8x8xf32>,
    %cst_22 = arith.constant dense<0.000000e+00> : vector<8x8xf32>
    %34 = tpu.matmul %25, %15, %cst_22 {dimension_numbers = #tpu.dot_dimension_numbers<[0], [0], [1], [1], [0, 1, 1, 1], [], []>} : vector<8x8xf32>, vector<8x8xf32>, vector<8x8xf32> -> vector<8x8xf32>
    %35 = arith.addf %26, %34 : vector<8x8xf32>
    %c0_23 = arith.constant 0 : index
    %c0_24 = arith.constant 0 : index
    %36 = vector.load %arg9[%c0_23, %c0_24] : memref<8x8xf32, #tpu.memory_space<vmem>>, vector<8x8xf32>
    tpu.vector_store %arg9[%c0_23, %c0_24], %35 {strides = array<i32>} : memref<8x8xf32, #tpu.memory_space<vmem>>, vector<8x8xf32>,
    return
  }
  func.func @transform_0(%arg0: i32, %arg1: i32) -> (i32, i32) {
    %c1_i32 = arith.constant 1 : i32
    %0 = arith.muli %arg0, %c1_i32 : i32
    %1 = arith.addi %0, %arg1 : i32
    %c0_i32 = arith.constant 0 : i32
    %c0_i32_0 = arith.constant 0 : i32
    return %1, %c0_i32 : i32, i32
  }
  func.func @transform_1(%arg0: i32, %arg1: i32) -> (i32, i32) {
    %c1_i32 = arith.constant 1 : i32
    %0 = arith.muli %arg0, %c1_i32 : i32
    %1 = arith.addi %0, %arg1 : i32
    %c0_i32 = arith.constant 0 : i32
    %c0_i32_0 = arith.constant 0 : i32
    return %1, %c0_i32 : i32, i32
  }
  func.func @transform_2(%arg0: i32, %arg1: i32) -> (i32, i32) {
    %c1_i32 = arith.constant 1 : i32
    %0 = arith.muli %arg0, %c1_i32 : i32
    %1 = arith.addi %0, %arg1 : i32
    %c0_i32 = arith.constant 0 : i32
    %c0_i32_0 = arith.constant 0 : i32
    return %1, %c0_i32 : i32, i32
  }
  func.func @transform_3(%arg0: i32, %arg1: i32) -> (i32, i32) {
    %c0_i32 = arith.constant 0 : i32
    %c0_i32_0 = arith.constant 0 : i32
    %c0_i32_1 = arith.constant 0 : i32
    return %c0_i32, %c0_i32_0 : i32, i32
  }
  func.func @transform_4(%arg0: i32, %arg1: i32) -> (i32, i32) {
    %c0_i32 = arith.constant 0 : i32
    %c0_i32_0 = arith.constant 0 : i32
    %c0_i32_1 = arith.constant 0 : i32
    return %c0_i32, %c0_i32_0 : i32, i32
  }
  func.func @transform_5(%arg0: i32, %arg1: i32) -> (i32, i32) {
    %c0_i32 = arith.constant 0 : i32
    %c0_i32_0 = arith.constant 0 : i32
    %c0_i32_1 = arith.constant 0 : i32
    return %c0_i32, %c0_i32_0 : i32, i32
  }
  func.func @transform_6(%arg0: i32, %arg1: i32) -> (i32, i32) {
    %c1_i32 = arith.constant 1 : i32
    %0 = arith.muli %arg0, %c1_i32 : i32
    %1 = arith.addi %0, %arg1 : i32
    %c0_i32 = arith.constant 0 : i32
    %c0_i32_0 = arith.constant 0 : i32
    return %1, %c0_i32 : i32, i32
  }
}

module attributes {stable_mosaic.version = 11 : i64} {
  func.func @_out_gate_norm_kernel(%arg0: i32, %arg1: i32, %arg2: memref<16x32xf32, #tpu.memory_space<vmem>>, %arg3: memref<16x32xf32, #tpu.memory_space<vmem>>, %arg4: memref<32x32xf32, #tpu.memory_space<vmem>>, %arg5: memref<32x8xf32, #tpu.memory_space<vmem>>, %arg6: memref<8x32xf32, #tpu.memory_space<vmem>>, %arg7: memref<1x32xf32, #tpu.memory_space<vmem>>, %arg8: memref<1x32xf32, #tpu.memory_space<vmem>>, %arg9: memref<16x32xf32, #tpu.memory_space<vmem>>, %arg10: memref<16x32xf32, #tpu.memory_space<vmem>>, %arg11: memref<16x8xf32, #tpu.memory_space<vmem>>) attributes {dimension_semantics = [#tpu.dimension_semantics<parallel>, #tpu.dimension_semantics<arbitrary>], iteration_bounds = array<i64: 1, 1>, scalar_prefetch = 0 : i64, scratch_operands = 2 : i64, tpu.core_type = #tpu.core_type<tc>, window_params = [{transform_indices = @transform_0, window_bounds = array<i64: 16, 32>}, {transform_indices = @transform_1, window_bounds = array<i64: 16, 32>}, {transform_indices = @transform_2, window_bounds = array<i64: 32, 32>}, {transform_indices = @transform_3, window_bounds = array<i64: 32, 8>}, {pipeline_mode = #tpu.pipeline_mode<synchronous>, transform_indices = @transform_4, window_bounds = array<i64: 8, 32>}, {pipeline_mode = #tpu.pipeline_mode<synchronous>, transform_indices = @transform_5, window_bounds = array<i64: 1, 32>}, {pipeline_mode = #tpu.pipeline_mode<synchronous>, transform_indices = @transform_6, window_bounds = array<i64: 1, 32>}, {transform_indices = @transform_7, window_bounds = array<i64: 16, 32>}]} {
    %c0_i32 = arith.constant 0 : i32
    %0 = arith.cmpi eq, %arg1, %c0_i32 : i32
    %1 = arith.extui %0 : i1 to i32
    %c0_i32_0 = arith.constant 0 : i32
    %2 = arith.cmpi ne, %1, %c0_i32_0 : i32
    scf.if %2 {
      %cst_19 = arith.constant 0.000000e+00 : f32
      %18 = vector.broadcast %cst_19 : f32 to vector<16x32xf32>
      %c0_20 = arith.constant 0 : index
      %c0_21 = arith.constant 0 : index
      %19 = vector.load %arg10[%c0_20, %c0_21] : memref<16x32xf32, #tpu.memory_space<vmem>>, vector<16x32xf32>
      tpu.vector_store %arg10[%c0_20, %c0_21], %18 {strides = array<i32>} : memref<16x32xf32, #tpu.memory_space<vmem>>, vector<16x32xf32>,
      %cst_22 = arith.constant 0.000000e+00 : f32
      %20 = vector.broadcast %cst_22 : f32 to vector<16x8xf32>
      %c0_23 = arith.constant 0 : index
      %c0_24 = arith.constant 0 : index
      %21 = vector.load %arg11[%c0_23, %c0_24] : memref<16x8xf32, #tpu.memory_space<vmem>>, vector<16x8xf32>
      tpu.vector_store %arg11[%c0_23, %c0_24], %20 {strides = array<i32>} : memref<16x8xf32, #tpu.memory_space<vmem>>, vector<16x8xf32>,
    } else {
    }
    %c0 = arith.constant 0 : index
    %c0_1 = arith.constant 0 : index
    %3 = vector.load %arg10[%c0, %c0_1] : memref<16x32xf32, #tpu.memory_space<vmem>>, vector<16x32xf32>
    %c0_2 = arith.constant 0 : index
    %c0_3 = arith.constant 0 : index
    %4 = vector.load %arg2[%c0_2, %c0_3] : memref<16x32xf32, #tpu.memory_space<vmem>>, vector<16x32xf32>
    %c0_4 = arith.constant 0 : index
    %c0_5 = arith.constant 0 : index
    %5 = vector.load %arg4[%c0_4, %c0_5] : memref<32x32xf32, #tpu.memory_space<vmem>>, vector<32x32xf32>
    %cst = arith.constant dense<0.000000e+00> : vector<16x32xf32>
    %6 = tpu.matmul %4, %5, %cst {dimension_numbers = #tpu.dot_dimension_numbers<[1], [0], [0], [1], [0, 0, 1, 1], [], []>} : vector<16x32xf32>, vector<32x32xf32>, vector<16x32xf32> -> vector<16x32xf32>
    %7 = arith.addf %3, %6 : vector<16x32xf32>
    %c0_6 = arith.constant 0 : index
    %c0_7 = arith.constant 0 : index
    %8 = vector.load %arg10[%c0_6, %c0_7] : memref<16x32xf32, #tpu.memory_space<vmem>>, vector<16x32xf32>
    tpu.vector_store %arg10[%c0_6, %c0_7], %7 {strides = array<i32>} : memref<16x32xf32, #tpu.memory_space<vmem>>, vector<16x32xf32>,
    %c0_8 = arith.constant 0 : index
    %c0_9 = arith.constant 0 : index
    %9 = vector.load %arg11[%c0_8, %c0_9] : memref<16x8xf32, #tpu.memory_space<vmem>>, vector<16x8xf32>
    %c0_10 = arith.constant 0 : index
    %c0_11 = arith.constant 0 : index
    %10 = vector.load %arg3[%c0_10, %c0_11] : memref<16x32xf32, #tpu.memory_space<vmem>>, vector<16x32xf32>
    %c0_12 = arith.constant 0 : index
    %c0_13 = arith.constant 0 : index
    %11 = vector.load %arg5[%c0_12, %c0_13] : memref<32x8xf32, #tpu.memory_space<vmem>>, vector<32x8xf32>
    %cst_14 = arith.constant dense<0.000000e+00> : vector<16x8xf32>
    %12 = tpu.matmul %10, %11, %cst_14 {dimension_numbers = #tpu.dot_dimension_numbers<[1], [0], [0], [1], [0, 0, 1, 1], [], []>} : vector<16x32xf32>, vector<32x8xf32>, vector<16x8xf32> -> vector<16x8xf32>
    %13 = arith.addf %9, %12 : vector<16x8xf32>
    %c0_15 = arith.constant 0 : index
    %c0_16 = arith.constant 0 : index
    %14 = vector.load %arg11[%c0_15, %c0_16] : memref<16x8xf32, #tpu.memory_space<vmem>>, vector<16x8xf32>
    tpu.vector_store %arg11[%c0_15, %c0_16], %13 {strides = array<i32>} : memref<16x8xf32, #tpu.memory_space<vmem>>, vector<16x8xf32>,
    %c0_i32_17 = arith.constant 0 : i32
    %15 = arith.cmpi eq, %arg1, %c0_i32_17 : i32
    %16 = arith.extui %15 : i1 to i32
    %c0_i32_18 = arith.constant 0 : i32
    %17 = arith.cmpi ne, %16, %c0_i32_18 : i32
    scf.if %17 {
      %c0_19 = arith.constant 0 : index
      %c0_20 = arith.constant 0 : index
      %18 = vector.load %arg11[%c0_19, %c0_20] : memref<16x8xf32, #tpu.memory_space<vmem>>, vector<16x8xf32>
      %c0_21 = arith.constant 0 : index
      %c0_22 = arith.constant 0 : index
      %19 = vector.load %arg6[%c0_21, %c0_22] : memref<8x32xf32, #tpu.memory_space<vmem>>, vector<8x32xf32>
      %cst_23 = arith.constant dense<0.000000e+00> : vector<16x32xf32>
      %20 = tpu.matmul %18, %19, %cst_23 {dimension_numbers = #tpu.dot_dimension_numbers<[1], [0], [0], [1], [0, 0, 1, 1], [], []>} : vector<16x8xf32>, vector<8x32xf32>, vector<16x32xf32> -> vector<16x32xf32>
      %21 = arith.negf %20 : vector<16x32xf32>
      %22 = math.exp %21 : vector<16x32xf32>
      %cst_24 = arith.constant 1.000000e+00 : f32
      %23 = vector.broadcast %cst_24 : f32 to vector<16x32xf32>
      %24 = arith.addf %23, %22 : vector<16x32xf32>
      %25 = arith.divf %23, %24 : vector<16x32xf32>
      %c0_25 = arith.constant 0 : index
      %c0_26 = arith.constant 0 : index
      %26 = vector.load %arg10[%c0_25, %c0_26] : memref<16x32xf32, #tpu.memory_space<vmem>>, vector<16x32xf32>
      %27 = arith.mulf %26, %25 : vector<16x32xf32>
      %cst_27 = arith.constant dense<0.000000e+00> : vector<16xf32>
      %28 = vector.multi_reduction <add>, %27, %cst_27 [1] : vector<16x32xf32> to vector<16xf32>
      %29 = vector.shape_cast %28 : vector<16xf32> to vector<16x1xf32>
      %cst_28 = arith.constant 3.200000e+01 : f32
      %30 = vector.broadcast %cst_28 : f32 to vector<16x1xf32>
      %31 = arith.divf %29, %30 : vector<16x1xf32>
      %32 = vector.broadcast %31 : vector<16x1xf32> to vector<16x32xf32>
      %33 = arith.subf %27, %32 : vector<16x32xf32>
      %34 = arith.mulf %33, %33 : vector<16x32xf32>
      %cst_29 = arith.constant dense<0.000000e+00> : vector<16xf32>
      %35 = vector.multi_reduction <add>, %34, %cst_29 [1] : vector<16x32xf32> to vector<16xf32>
      %36 = vector.shape_cast %35 : vector<16xf32> to vector<16x1xf32>
      %cst_30 = arith.constant 3.200000e+01 : f32
      %37 = vector.broadcast %cst_30 : f32 to vector<16x1xf32>
      %38 = arith.divf %36, %37 : vector<16x1xf32>
      %39 = vector.broadcast %31 : vector<16x1xf32> to vector<16x32xf32>
      %40 = arith.subf %27, %39 : vector<16x32xf32>
      %cst_31 = arith.constant 9.99999974E-6 : f32
      %41 = vector.broadcast %cst_31 : f32 to vector<16x1xf32>
      %42 = arith.addf %38, %41 : vector<16x1xf32>
      %43 = math.rsqrt %42 : vector<16x1xf32>
      %44 = vector.broadcast %43 : vector<16x1xf32> to vector<16x32xf32>
      %45 = arith.mulf %40, %44 : vector<16x32xf32>
      %c0_32 = arith.constant 0 : index
      %c0_33 = arith.constant 0 : index
      %46 = vector.load %arg7[%c0_32, %c0_33] : memref<1x32xf32, #tpu.memory_space<vmem>>, vector<1x32xf32>
      %47 = vector.broadcast %46 : vector<1x32xf32> to vector<16x32xf32>
      %48 = arith.mulf %45, %47 : vector<16x32xf32>
      %c0_34 = arith.constant 0 : index
      %c0_35 = arith.constant 0 : index
      %49 = vector.load %arg8[%c0_34, %c0_35] : memref<1x32xf32, #tpu.memory_space<vmem>>, vector<1x32xf32>
      %50 = vector.broadcast %49 : vector<1x32xf32> to vector<16x32xf32>
      %51 = arith.addf %48, %50 : vector<16x32xf32>
      %c0_36 = arith.constant 0 : index
      %c0_37 = arith.constant 0 : index
      %52 = vector.load %arg9[%c0_36, %c0_37] : memref<16x32xf32, #tpu.memory_space<vmem>>, vector<16x32xf32>
      tpu.vector_store %arg9[%c0_36, %c0_37], %51 {strides = array<i32>} : memref<16x32xf32, #tpu.memory_space<vmem>>, vector<16x32xf32>,
    } else {
    }
    return
  }
  func.func @transform_0(%arg0: i32, %arg1: i32) -> (i32, i32) {
    %c0_i32 = arith.constant 0 : i32
    return %arg0, %arg1 : i32, i32
  }
  func.func @transform_1(%arg0: i32, %arg1: i32) -> (i32, i32) {
    %c0_i32 = arith.constant 0 : i32
    return %arg0, %arg1 : i32, i32
  }
  func.func @transform_2(%arg0: i32, %arg1: i32) -> (i32, i32) {
    %c0_i32 = arith.constant 0 : i32
    %c0_i32_0 = arith.constant 0 : i32
    return %arg1, %c0_i32 : i32, i32
  }
  func.func @transform_3(%arg0: i32, %arg1: i32) -> (i32, i32) {
    %c0_i32 = arith.constant 0 : i32
    %c0_i32_0 = arith.constant 0 : i32
    return %arg1, %c0_i32 : i32, i32
  }
  func.func @transform_4(%arg0: i32, %arg1: i32) -> (i32, i32) {
    %c0_i32 = arith.constant 0 : i32
    %c0_i32_0 = arith.constant 0 : i32
    %c0_i32_1 = arith.constant 0 : i32
    return %c0_i32, %c0_i32_0 : i32, i32
  }
  func.func @transform_5(%arg0: i32, %arg1: i32) -> (i32, i32) {
    %c0_i32 = arith.constant 0 : i32
    %c0_i32_0 = arith.constant 0 : i32
    %c0_i32_1 = arith.constant 0 : i32
    return %c0_i32, %c0_i32_0 : i32, i32
  }
  func.func @transform_6(%arg0: i32, %arg1: i32) -> (i32, i32) {
    %c0_i32 = arith.constant 0 : i32
    %c0_i32_0 = arith.constant 0 : i32
    %c0_i32_1 = arith.constant 0 : i32
    return %c0_i32, %c0_i32_0 : i32, i32
  }
  func.func @transform_7(%arg0: i32, %arg1: i32) -> (i32, i32) {
    %c0_i32 = arith.constant 0 : i32
    %c0_i32_0 = arith.constant 0 : i32
    return %arg0, %c0_i32 : i32, i32
  }
}

</mosaic_0001>

<llo_original>
// kernel: linear_attention_forward.7
$region0: #{linear_attention_forward.7}
  #allocation0 [shape = 'u32[]', space=smem, size = 0x4, offset = 0x4, fixed_abs, tag = 'smem constant byte address 0x4 - core index']
  #allocation1 [shape = 'u32[144,128]{1,0:T(1,128)}', space=vmem, size = 0x12000, scoped, tag = 'internal scratch']
  #allocation2 [shape = 'f32[16,32]{1,0:T(8,128)}', space=vmem, size = 0x2000, scoped, tag = 'scratch operand']
  %s0 = inlined_call_operand.vmem [shape: f32[16,32], index: 0, kind: input, shape index: {}]
  %s1 = inlined_call_operand.vmem [shape: f32[32,32], index: 1, kind: input, shape index: {}]
  %s2 = inlined_call_operand.vmem [shape: f32[16,32], index: 2, kind: output, shape index: {}]
  %s3 = sld [smem:[#allocation0]]
  $region26: #{linear_attention_forward.7} parent=0
    _
  %s5 = ssub.s32 1, %s3
  %s6 = scalar_select 0, %s5, %s3
  // Predicated region
  $region2: #{linear_attention_forward.7} parent=0 // pred_check
    _
  $region3: #{linear_attention_forward.7} parent=0 // pred_check_branch
    %8 = sbr.rel (0) target = $region5
  $region4: #{linear_attention_forward.7} parent=0 // pred_region
    _
  $region5: #{linear_attention_forward.7} parent=0 // pred_fallthru
    _
  // Predicated region
  $region6: #{linear_attention_forward.7} parent=0 // pred_check
    _
  $region7: #{linear_attention_forward.7} parent=0 // pred_check_branch
    %10 = sbr.rel (0) target = $region9
  $region8: #{linear_attention_forward.7} parent=0 // pred_region
    _
  $region9: #{linear_attention_forward.7} parent=0 // pred_fallthru
    _
  %p11 = scmp.eq.s32.totalorder 0, 0
  // Predicated region
  $region10: #{linear_attention_forward.7} parent=0 // pred_check
    %p12 = pneg %p11
  $region11: #{linear_attention_forward.7} parent=0 // pred_check_branch
    %14 = sbr.rel (%p12) target = $region13
  $region12: #{linear_attention_forward.7} parent=0 // pred_region
    %vm15 = vcmask 261120
    %16 = vst.msk [vmem:[#allocation2] sm:$0xff] %vm15, 0.0
    %17 = vst.msk [vmem:[#allocation2 + $0x8] sm:$0xff] %vm15, 0.0
  $region13: #{linear_attention_forward.7} parent=0 // pred_fallthru
    _
  %v18 = vld [vmem:[#allocation2] sm:$0xff]
  %v19 = vld [vmem:[#allocation2 + $0x8] sm:$0xff]
  %v20 = vld [vmem:[%s0] sm:$0xff]
  %v21 = vld [vmem:[%s0 + $0x8] sm:$0xff]
  %v22 = vld [vmem:[%s1] sm:$0xff]
  %v23 = vld [vmem:[%s1 + $0x8] sm:$0xff]
  %v24 = vld [vmem:[%s1 + $0x10] sm:$0xff]
  %v25 = vld [vmem:[%s1 + $0x18] sm:$0xff]
  %vm26 = vcmask 261120
  %v28 = vsel %vm26, %v20, 0
  %v31 = vsel %vm26, %v21, 0
  %33 = vmatprep.subr.mxu0 0.0
  %34 = vmatpush1.msra.mxu0 %v22
  %35 = vmatprep.subr.mxu0 0.0
  %36 = vmatpush1.msra.mxu0 %v23
  %37 = vmatprep.subr.mxu0 0.0
  %38 = vmatpush1.msra.mxu0 %v24
  %39 = vmatprep.subr.mxu0 0.0
  %40 = vmatpush1.msra.mxu0 %v25
  %41 = vmatprep.subr.mxu0 0.0
  %42 = vmatpush1.msra.mxu0 0.0
  %43 = vmatprep.subr.mxu0 0.0
  %44 = vmatpush1.msra.mxu0 0.0
  %45 = vmatprep.subr.mxu0 0.0
  %46 = vmatpush1.msra.mxu0 0.0
  %47 = vmatprep.subr.mxu0 0.0
  %48 = vmatpush1.msra.mxu0 0.0
  %49 = vmatprep.subr.mxu0 0.0
  %50 = vmatpush1.msra.mxu0 0.0
  %51 = vmatprep.subr.mxu0 0.0
  %52 = vmatpush1.msra.mxu0 0.0
  %53 = vmatprep.subr.mxu0 0.0
  %54 = vmatpush1.msra.mxu0 0.0
  %55 = vmatprep.subr.mxu0 0.0
  %56 = vmatpush1.msra.mxu0 0.0
  %57 = vmatprep.subr.mxu0 0.0
  %58 = vmatpush1.msra.mxu0 0.0
  %59 = vmatprep.subr.mxu0 0.0
  %60 = vmatpush1.msra.mxu0 0.0
  %61 = vmatprep.subr.mxu0 0.0
  %62 = vmatpush1.msra.mxu0 0.0
  %63 = vmatprep.subr.mxu0 0.0
  %64 = vmatpush1.msra.mxu0 0.0
  %65 = vmatprep.subr.mxu0 0.0
  %66 = vmatpush1.msra.mxu0 0.0
  %67 = vmatprep.subr.mxu0 0.0
  %68 = vmatpush1.msra.mxu0 0.0
  %69 = vmatprep.subr.mxu0 0.0
  %70 = vmatpush1.msra.mxu0 0.0
  %71 = vmatprep.subr.mxu0 0.0
  %72 = vmatpush1.msra.mxu0 0.0
  %73 = vmatprep.subr.mxu0 0.0
  %74 = vmatpush1.msra.mxu0 0.0
  %75 = vmatprep.subr.mxu0 0.0
  %76 = vmatpush1.msra.mxu0 0.0
  %77 = vmatprep.subr.mxu0 0.0
  %78 = vmatpush1.msra.mxu0 0.0
  %79 = vmatprep.subr.mxu0 0.0
  %80 = vmatpush1.msra.mxu0 0.0
  %81 = vmatprep.subr.mxu0 0.0
  %82 = vmatpush1.msra.mxu0 0.0
  %83 = vmatprep.subr.mxu0 0.0
  %84 = vmatpush1.msra.mxu0 0.0
  %85 = vmatprep.subr.mxu0 0.0
  %86 = vmatpush1.msra.mxu0 0.0
  %87 = vmatprep.subr.mxu0 0.0
  %88 = vmatpush1.msra.mxu0 0.0
  %89 = vmatprep.subr.mxu0 0.0
  %90 = vmatpush1.msra.mxu0 0.0
  %91 = vmatprep.subr.mxu0 0.0
  %92 = vmatpush1.msra.mxu0 0.0
  %93 = vmatprep.subr.mxu0 0.0
  %94 = vmatpush1.msra.mxu0 0.0
  %95 = vmatprep.subr.mxu0 0.0
  %96 = vmatpush1.msra.mxu0 0.0
  %97 = vmatprep.mubr.f32.mxu0 0.0
  %98 = vmatmul.mubr.f32.gmra.mrb[0].mxu0 %v28
  %v99 = vpop.f32.mrb[0].mxu0
  %v100 = vadd.f32 0.0, %v99
  %v101 = vpop.f32.mrb[0].mxu0
  %102 = vmatprep.mubr.f32.mxu0 0.0
  %103 = vmatmul.mubr.f32.gmra.mrb[0].mxu0 %v31
  %v104 = vpop.f32.mrb[0].mxu0
  %v105 = vadd.f32 0.0, %v104
  %v106 = vpop.f32.mrb[0].mxu0
  %107 = vdwg.mxu0
  %v108 = vadd.f32 %v18, %v100
  %v109 = vadd.f32 %v19, %v105
  %110 = vst.msk [vmem:[#allocation2] sm:$0xff] %vm26, %v108
  %111 = vst.msk [vmem:[#allocation2 + $0x8] sm:$0xff] %vm26, %v109
  // Predicated region
  $region14: #{linear_attention_forward.7} parent=0 // pred_check
    %p112 = pneg %p11
  $region15: #{linear_attention_forward.7} parent=0 // pred_check_branch
    %114 = sbr.rel (%p112) target = $region17
  $region16: #{linear_attention_forward.7} parent=0 // pred_region
    %v115 = vld [vmem:[#allocation2] sm:$0xff]
    %v116 = vld [vmem:[#allocation2 + $0x8] sm:$0xff]
    %117 = vst.msk [vmem:[%s2] sm:$0xff] %vm26, %v115
    %118 = vst.msk [vmem:[%s2 + $0x8] sm:$0xff] %vm26, %v116
  $region17: #{linear_attention_forward.7} parent=0 // pred_fallthru
    _
  // Predicated region
  $region18: #{linear_attention_forward.7} parent=0 // pred_check
    _
  $region19: #{linear_attention_forward.7} parent=0 // pred_check_branch
    %120 = sbr.rel (0) target = $region21
  $region20: #{linear_attention_forward.7} parent=0 // pred_region
    _
  $region21: #{linear_attention_forward.7} parent=0 // pred_fallthru
    _
  // Predicated region
  $region22: #{linear_attention_forward.7} parent=0 // pred_check
    _
  $region23: #{linear_attention_forward.7} parent=0 // pred_check_branch
    %122 = sbr.rel (0) target = $region25
  $region24: #{linear_attention_forward.7} parent=0 // pred_region
    _
  $region25: #{linear_attention_forward.7} parent=0 // pred_fallthru
    _

// kernel: linear_attention_forward.6
$region0: #{linear_attention_forward.6}
  #allocation0 [shape = 'u32[]', space=smem, size = 0x4, offset = 0x4, fixed_abs, tag = 'smem constant byte address 0x4 - core index']
  #allocation1 [shape = 'u32[144,128]{1,0:T(1,128)}', space=vmem, size = 0x12000, scoped, tag = 'internal scratch']
  #allocation2 [shape = 'f32[16,32]{1,0:T(8,128)}', space=vmem, size = 0x2000, scoped, tag = 'scratch operand']
  %s0 = inlined_call_operand.vmem [shape: f32[16,32], index: 0, kind: input, shape index: {}]
  %s1 = inlined_call_operand.vmem [shape: f32[32,32], index: 1, kind: input, shape index: {}]
  %s2 = inlined_call_operand.vmem [shape: f32[16,32], index: 2, kind: output, shape index: {}]
  %s3 = sld [smem:[#allocation0]]
  $region26: #{linear_attention_forward.6} parent=0
    _
  %s5 = ssub.s32 1, %s3
  %s6 = scalar_select 0, %s5, %s3
  // Predicated region
  $region2: #{linear_attention_forward.6} parent=0 // pred_check
    _
  $region3: #{linear_attention_forward.6} parent=0 // pred_check_branch
    %8 = sbr.rel (0) target = $region5
  $region4: #{linear_attention_forward.6} parent=0 // pred_region
    _
  $region5: #{linear_attention_forward.6} parent=0 // pred_fallthru
    _
  // Predicated region
  $region6: #{linear_attention_forward.6} parent=0 // pred_check
    _
  $region7: #{linear_attention_forward.6} parent=0 // pred_check_branch
    %10 = sbr.rel (0) target = $region9
  $region8: #{linear_attention_forward.6} parent=0 // pred_region
    _
  $region9: #{linear_attention_forward.6} parent=0 // pred_fallthru
    _
  %p11 = scmp.eq.s32.totalorder 0, 0
  // Predicated region
  $region10: #{linear_attention_forward.6} parent=0 // pred_check
    %p12 = pneg %p11
  $region11: #{linear_attention_forward.6} parent=0 // pred_check_branch
    %14 = sbr.rel (%p12) target = $region13
  $region12: #{linear_attention_forward.6} parent=0 // pred_region
    %vm15 = vcmask 261120
    %16 = vst.msk [vmem:[#allocation2] sm:$0xff] %vm15, 0.0
    %17 = vst.msk [vmem:[#allocation2 + $0x8] sm:$0xff] %vm15, 0.0
  $region13: #{linear_attention_forward.6} parent=0 // pred_fallthru
    _
  %v18 = vld [vmem:[#allocation2] sm:$0xff]
  %v19 = vld [vmem:[#allocation2 + $0x8] sm:$0xff]
  %v20 = vld [vmem:[%s0] sm:$0xff]
  %v21 = vld [vmem:[%s0 + $0x8] sm:$0xff]
  %v22 = vld [vmem:[%s1] sm:$0xff]
  %v23 = vld [vmem:[%s1 + $0x8] sm:$0xff]
  %v24 = vld [vmem:[%s1 + $0x10] sm:$0xff]
  %v25 = vld [vmem:[%s1 + $0x18] sm:$0xff]
  %vm26 = vcmask 261120
  %v28 = vsel %vm26, %v20, 0
  %v31 = vsel %vm26, %v21, 0
  %33 = vmatprep.subr.mxu0 0.0
  %34 = vmatpush1.msra.mxu0 %v22
  %35 = vmatprep.subr.mxu0 0.0
  %36 = vmatpush1.msra.mxu0 %v23
  %37 = vmatprep.subr.mxu0 0.0
  %38 = vmatpush1.msra.mxu0 %v24
  %39 = vmatprep.subr.mxu0 0.0
  %40 = vmatpush1.msra.mxu0 %v25
  %41 = vmatprep.subr.mxu0 0.0
  %42 = vmatpush1.msra.mxu0 0.0
  %43 = vmatprep.subr.mxu0 0.0
  %44 = vmatpush1.msra.mxu0 0.0
  %45 = vmatprep.subr.mxu0 0.0
  %46 = vmatpush1.msra.mxu0 0.0
  %47 = vmatprep.subr.mxu0 0.0
  %48 = vmatpush1.msra.mxu0 0.0
  %49 = vmatprep.subr.mxu0 0.0
  %50 = vmatpush1.msra.mxu0 0.0
  %51 = vmatprep.subr.mxu0 0.0
  %52 = vmatpush1.msra.mxu0 0.0
  %53 = vmatprep.subr.mxu0 0.0
  %54 = vmatpush1.msra.mxu0 0.0
  %55 = vmatprep.subr.mxu0 0.0
  %56 = vmatpush1.msra.mxu0 0.0
  %57 = vmatprep.subr.mxu0 0.0
  %58 = vmatpush1.msra.mxu0 0.0
  %59 = vmatprep.subr.mxu0 0.0
  %60 = vmatpush1.msra.mxu0 0.0
  %61 = vmatprep.subr.mxu0 0.0
  %62 = vmatpush1.msra.mxu0 0.0
  %63 = vmatprep.subr.mxu0 0.0
  %64 = vmatpush1.msra.mxu0 0.0
  %65 = vmatprep.subr.mxu0 0.0
  %66 = vmatpush1.msra.mxu0 0.0
  %67 = vmatprep.subr.mxu0 0.0
  %68 = vmatpush1.msra.mxu0 0.0
  %69 = vmatprep.subr.mxu0 0.0
  %70 = vmatpush1.msra.mxu0 0.0
  %71 = vmatprep.subr.mxu0 0.0
  %72 = vmatpush1.msra.mxu0 0.0
  %73 = vmatprep.subr.mxu0 0.0
  %74 = vmatpush1.msra.mxu0 0.0
  %75 = vmatprep.subr.mxu0 0.0
  %76 = vmatpush1.msra.mxu0 0.0
  %77 = vmatprep.subr.mxu0 0.0
  %78 = vmatpush1.msra.mxu0 0.0
  %79 = vmatprep.subr.mxu0 0.0
  %80 = vmatpush1.msra.mxu0 0.0
  %81 = vmatprep.subr.mxu0 0.0
  %82 = vmatpush1.msra.mxu0 0.0
  %83 = vmatprep.subr.mxu0 0.0
  %84 = vmatpush1.msra.mxu0 0.0
  %85 = vmatprep.subr.mxu0 0.0
  %86 = vmatpush1.msra.mxu0 0.0
  %87 = vmatprep.subr.mxu0 0.0
  %88 = vmatpush1.msra.mxu0 0.0
  %89 = vmatprep.subr.mxu0 0.0
  %90 = vmatpush1.msra.mxu0 0.0
  %91 = vmatprep.subr.mxu0 0.0
  %92 = vmatpush1.msra.mxu0 0.0
  %93 = vmatprep.subr.mxu0 0.0
  %94 = vmatpush1.msra.mxu0 0.0
  %95 = vmatprep.subr.mxu0 0.0
  %96 = vmatpush1.msra.mxu0 0.0
  %97 = vmatprep.mubr.f32.mxu0 0.0
  %98 = vmatmul.mubr.f32.gmra.mrb[0].mxu0 %v28
  %v99 = vpop.f32.mrb[0].mxu0
  %v100 = vadd.f32 0.0, %v99
  %v101 = vpop.f32.mrb[0].mxu0
  %102 = vmatprep.mubr.f32.mxu0 0.0
  %103 = vmatmul.mubr.f32.gmra.mrb[0].mxu0 %v31
  %v104 = vpop.f32.mrb[0].mxu0
  %v105 = vadd.f32 0.0, %v104
  %v106 = vpop.f32.mrb[0].mxu0
  %107 = vdwg.mxu0
  %v108 = vadd.f32 %v18, %v100
  %v109 = vadd.f32 %v19, %v105
  %110 = vst.msk [vmem:[#allocation2] sm:$0xff] %vm26, %v108
  %111 = vst.msk [vmem:[#allocation2 + $0x8] sm:$0xff] %vm26, %v109
  // Predicated region
  $region14: #{linear_attention_forward.6} parent=0 // pred_check
    %p112 = pneg %p11
  $region15: #{linear_attention_forward.6} parent=0 // pred_check_branch
    %114 = sbr.rel (%p112) target = $region17
  $region16: #{linear_attention_forward.6} parent=0 // pred_region
    %v115 = vld [vmem:[#allocation2] sm:$0xff]
    %v116 = vld [vmem:[#allocation2 + $0x8] sm:$0xff]
    %v117 = vxor.u32 %v115, 2147483648
    %v118 = vxor.u32 %v116, 2147483648
    %v119 = vmul.f32 %v117, 1.442695
    %v120 = vpow.pop %v119
    %v121 = vmul.f32 %v118, 1.442695
    %v122 = vpow.pop %v121
    %v123 = vadd.f32 %v120, 1.0
    %v124 = vadd.f32 %v122, 1.0
    %v125 = vrcp.pop %v123
    %v126 = vmul.f32 1.0, %v125
    %v127 = vrcp.pop %v124
    %v128 = vmul.f32 1.0, %v127
    %v129 = vmul.f32 %v115, %v126
    %v130 = vmul.f32 %v116, %v128
    %131 = vst.msk [vmem:[%s2] sm:$0xff] %vm26, %v129
    %132 = vst.msk [vmem:[%s2 + $0x8] sm:$0xff] %vm26, %v130
  $region17: #{linear_attention_forward.6} parent=0 // pred_fallthru
    _
  // Predicated region
  $region18: #{linear_attention_forward.6} parent=0 // pred_check
    _
  $region19: #{linear_attention_forward.6} parent=0 // pred_check_branch
    %134 = sbr.rel (0) target = $region21
  $region20: #{linear_attention_forward.6} parent=0 // pred_region
    _
  $region21: #{linear_attention_forward.6} parent=0 // pred_fallthru
    _
  // Predicated region
  $region22: #{linear_attention_forward.6} parent=0 // pred_check
    _
  $region23: #{linear_attention_forward.6} parent=0 // pred_check_branch
    %136 = sbr.rel (0) target = $region25
  $region24: #{linear_attention_forward.6} parent=0 // pred_region
    _
  $region25: #{linear_attention_forward.6} parent=0 // pred_fallthru
    _

// kernel: linear_attention_forward.5
$region0: #{linear_attention_forward.5}
  #allocation0 [shape = 'u32[]', space=smem, size = 0x4, offset = 0x4, fixed_abs, tag = 'smem constant byte address 0x4 - core index']
  #allocation1 [shape = 'u32[144,128]{1,0:T(1,128)}', space=vmem, size = 0x12000, scoped, tag = 'internal scratch']
  #allocation2 [shape = 'f32[16,32]{1,0:T(8,128)}', space=vmem, size = 0x2000, scoped, tag = 'scratch operand']
  %s0 = inlined_call_operand.vmem [shape: f32[16,32], index: 0, kind: input, shape index: {}]
  %s1 = inlined_call_operand.hbm [shape: f32[32,32], index: 1, kind: input, shape index: {}]
  %s2 = inlined_call_operand.vmem [shape: f32[16,32], index: 2, kind: output, shape index: {}]
  %s3 = sld [smem:[#allocation0]]
  $region30: #{linear_attention_forward.5} parent=0
    _
  %s5 = ssub.s32 1, %s3
  %s6 = scalar_select 0, %s5, %s3
  $region1: #{linear_attention_forward.5} parent=0
    #allocation3 [shape = 'u8[16384]{0}', space=vmem, size = 0x4000, scoped, tag = 'input window, operand 1, single buffered']
    #allocation4 [shape = 's32[1]{0}', space=sflag, size = 0x4, scoped, tag = 'scoped memory for linear_attention_forward.5']
    %7 = vsyncpa [#allocation4], 0
    // Predicated region
    $region2: #{linear_attention_forward.5} parent=1 // pred_check
      _
    $region3: #{linear_attention_forward.5} parent=1 // pred_check_branch
      %9 = sbr.rel (0) target = $region5
    $region4: #{linear_attention_forward.5} parent=1 // pred_region
      _
    $region5: #{linear_attention_forward.5} parent=1 // pred_fallthru
      _
    // Predicated region
    $region6: #{linear_attention_forward.5} parent=1 // pred_check
      _
    $region7: #{linear_attention_forward.5} parent=1 // pred_check_branch
      %11 = sbr.rel (0) target = $region9
    $region8: #{linear_attention_forward.5} parent=1 // pred_region
      %s13 = ssub.s32 512, 512
      %14 = vsyncadd [#allocation4], %s13
      %s15 = sshll.u32 [#allocation3], 4
      %s16 = int_to_ptr.vmem [resolvable:$true] %s15
      %21 = dma.hbm_to_vmem [thread:$0]  %s1, 512, %s16, [#allocation4], 128, 128, 8
    $region9: #{linear_attention_forward.5} parent=1 // pred_fallthru
      _
    // Predicated region
    $region10: #{linear_attention_forward.5} parent=1 // pred_check
      _
    $region11: #{linear_attention_forward.5} parent=1 // pred_check_branch
      %23 = sbr.rel (0) target = $region13
    $region12: #{linear_attention_forward.5} parent=1 // pred_region
      %24 = dma.done [#allocation4], 512
    $region13: #{linear_attention_forward.5} parent=1 // pred_fallthru
      _
    %p25 = scmp.eq.s32.totalorder 0, 0
    // Predicated region
    $region14: #{linear_attention_forward.5} parent=1 // pred_check
      %p26 = pneg %p25
    $region15: #{linear_attention_forward.5} parent=1 // pred_check_branch
      %28 = sbr.rel (%p26) target = $region17
    $region16: #{linear_attention_forward.5} parent=1 // pred_region
      %vm29 = vcmask 261120
      %30 = vst.msk [vmem:[#allocation2] sm:$0xff] %vm29, 0.0
      %31 = vst.msk [vmem:[#allocation2 + $0x8] sm:$0xff] %vm29, 0.0
    $region17: #{linear_attention_forward.5} parent=1 // pred_fallthru
      _
    %v32 = vld [vmem:[#allocation2] sm:$0xff]
    %v33 = vld [vmem:[#allocation2 + $0x8] sm:$0xff]
    %v34 = vld [vmem:[%s0] sm:$0xff]
    %v35 = vld [vmem:[%s0 + $0x8] sm:$0xff]
    %v36 = vld [vmem:[#allocation3] sm:$0xff]
    %v37 = vld [vmem:[#allocation3 + $0x8] sm:$0xff]
    %v38 = vld [vmem:[#allocation3 + $0x10] sm:$0xff]
    %v39 = vld [vmem:[#allocation3 + $0x18] sm:$0xff]
    %vm40 = vcmask 261120
    %v42 = vsel %vm40, %v34, 0
    %v45 = vsel %vm40, %v35, 0
    %47 = vmatprep.subr.mxu0 0.0
    %48 = vmatpush1.msra.mxu0 %v36
    %49 = vmatprep.subr.mxu0 0.0
    %50 = vmatpush1.msra.mxu0 %v37
    %51 = vmatprep.subr.mxu0 0.0
    %52 = vmatpush1.msra.mxu0 %v38
    %53 = vmatprep.subr.mxu0 0.0
    %54 = vmatpush1.msra.mxu0 %v39
    %55 = vmatprep.subr.mxu0 0.0
    %56 = vmatpush1.msra.mxu0 0.0
    %57 = vmatprep.subr.mxu0 0.0
    %58 = vmatpush1.msra.mxu0 0.0
    %59 = vmatprep.subr.mxu0 0.0
    %60 = vmatpush1.msra.mxu0 0.0
    %61 = vmatprep.subr.mxu0 0.0
    %62 = vmatpush1.msra.mxu0 0.0
    %63 = vmatprep.subr.mxu0 0.0
    %64 = vmatpush1.msra.mxu0 0.0
    %65 = vmatprep.subr.mxu0 0.0
    %66 = vmatpush1.msra.mxu0 0.0
    %67 = vmatprep.subr.mxu0 0.0
    %68 = vmatpush1.msra.mxu0 0.0
    %69 = vmatprep.subr.mxu0 0.0
    %70 = vmatpush1.msra.mxu0 0.0
    %71 = vmatprep.subr.mxu0 0.0
    %72 = vmatpush1.msra.mxu0 0.0
    %73 = vmatprep.subr.mxu0 0.0
    %74 = vmatpush1.msra.mxu0 0.0
    %75 = vmatprep.subr.mxu0 0.0
    %76 = vmatpush1.msra.mxu0 0.0
    %77 = vmatprep.subr.mxu0 0.0
    %78 = vmatpush1.msra.mxu0 0.0
    %79 = vmatprep.subr.mxu0 0.0
    %80 = vmatpush1.msra.mxu0 0.0
    %81 = vmatprep.subr.mxu0 0.0
    %82 = vmatpush1.msra.mxu0 0.0
    %83 = vmatprep.subr.mxu0 0.0
    %84 = vmatpush1.msra.mxu0 0.0
    %85 = vmatprep.subr.mxu0 0.0
    %86 = vmatpush1.msra.mxu0 0.0
    %87 = vmatprep.subr.mxu0 0.0
    %88 = vmatpush1.msra.mxu0 0.0
    %89 = vmatprep.subr.mxu0 0.0
    %90 = vmatpush1.msra.mxu0 0.0
    %91 = vmatprep.subr.mxu0 0.0
    %92 = vmatpush1.msra.mxu0 0.0
    %93 = vmatprep.subr.mxu0 0.0
    %94 = vmatpush1.msra.mxu0 0.0
    %95 = vmatprep.subr.mxu0 0.0
    %96 = vmatpush1.msra.mxu0 0.0
    %97 = vmatprep.subr.mxu0 0.0
    %98 = vmatpush1.msra.mxu0 0.0
    %99 = vmatprep.subr.mxu0 0.0
    %100 = vmatpush1.msra.mxu0 0.0
    %101 = vmatprep.subr.mxu0 0.0
    %102 = vmatpush1.msra.mxu0 0.0
    %103 = vmatprep.subr.mxu0 0.0
    %104 = vmatpush1.msra.mxu0 0.0
    %105 = vmatprep.subr.mxu0 0.0
    %106 = vmatpush1.msra.mxu0 0.0
    %107 = vmatprep.subr.mxu0 0.0
    %108 = vmatpush1.msra.mxu0 0.0
    %109 = vmatprep.subr.mxu0 0.0
    %110 = vmatpush1.msra.mxu0 0.0
    %111 = vmatprep.mubr.f32.mxu0 0.0
    %112 = vmatmul.mubr.f32.gmra.mrb[0].mxu0 %v42
    %v113 = vpop.f32.mrb[0].mxu0
    %v114 = vadd.f32 0.0, %v113
    %v115 = vpop.f32.mrb[0].mxu0
    %116 = vmatprep.mubr.f32.mxu0 0.0
    %117 = vmatmul.mubr.f32.gmra.mrb[0].mxu0 %v45
    %v118 = vpop.f32.mrb[0].mxu0
    %v119 = vadd.f32 0.0, %v118
    %v120 = vpop.f32.mrb[0].mxu0
    %121 = vdwg.mxu0
    %v122 = vadd.f32 %v32, %v114
    %v123 = vadd.f32 %v33, %v119
    %124 = vst.msk [vmem:[#allocation2] sm:$0xff] %vm40, %v122
    %125 = vst.msk [vmem:[#allocation2 + $0x8] sm:$0xff] %vm40, %v123
    // Predicated region
    $region18: #{linear_attention_forward.5} parent=1 // pred_check
      %p126 = pneg %p25
    $region19: #{linear_attention_forward.5} parent=1 // pred_check_branch
      %128 = sbr.rel (%p126) target = $region21
    $region20: #{linear_attention_forward.5} parent=1 // pred_region
      %v129 = vld [vmem:[#allocation2] sm:$0xff]
      %v130 = vld [vmem:[#allocation2 + $0x8] sm:$0xff]
      %v131 = vxor.u32 %v129, 2147483648
      %v132 = vxor.u32 %v130, 2147483648
      %v133 = vmul.f32 %v131, 1.442695
      %v134 = vpow.pop %v133
      %v135 = vmul.f32 %v132, 1.442695
      %v136 = vpow.pop %v135
      %v137 = vadd.f32 %v134, 1.0
      %v138 = vadd.f32 %v136, 1.0
      %v139 = vrcp.pop %v137
      %v140 = vmul.f32 1.0, %v139
      %v141 = vrcp.pop %v138
      %v142 = vmul.f32 1.0, %v141
      %v143 = vmul.f32 %v129, %v140
      %v144 = vmul.f32 %v130, %v142
      %145 = vst.msk [vmem:[%s2] sm:$0xff] %vm40, %v143
      %146 = vst.msk [vmem:[%s2 + $0x8] sm:$0xff] %vm40, %v144
    $region21: #{linear_attention_forward.5} parent=1 // pred_fallthru
      _
    // Predicated region
    $region22: #{linear_attention_forward.5} parent=1 // pred_check
      _
    $region23: #{linear_attention_forward.5} parent=1 // pred_check_branch
      %148 = sbr.rel (0) target = $region25
    $region24: #{linear_attention_forward.5} parent=1 // pred_region
      _
    $region25: #{linear_attention_forward.5} parent=1 // pred_fallthru
      _
    // Predicated region
    $region26: #{linear_attention_forward.5} parent=1 // pred_check
      _
    $region27: #{linear_attention_forward.5} parent=1 // pred_check_branch
      %150 = sbr.rel (0) target = $region29
    $region28: #{linear_attention_forward.5} parent=1 // pred_region
      _
    $region29: #{linear_attention_forward.5} parent=1 // pred_fallthru
      _
    %151 = vsyncpa [#allocation4], 1

// kernel: linear_attention_forward.8
$region0: #{linear_attention_forward.8}
  #allocation0 [shape = 'u32[]', space=smem, size = 0x4, offset = 0x4, fixed_abs, tag = 'smem constant byte address 0x4 - core index']
  #allocation1 [shape = 'u32[144,128]{1,0:T(1,128)}', space=vmem, size = 0x12000, scoped, tag = 'internal scratch']
  #allocation2 [shape = 'f32[8,8]{1,0:T(8,128)}', space=vmem, size = 0x1000, scoped, tag = 'scratch operand']
  %s0 = inlined_call_operand.vmem [shape: f32[64,8], index: 0, kind: input, shape index: {}]
  %s1 = inlined_call_operand.vmem [shape: f32[64,8], index: 1, kind: input, shape index: {}]
  %s2 = inlined_call_operand.vmem [shape: f32[64,8], index: 2, kind: input, shape index: {}]
  %s3 = inlined_call_operand.vmem [shape: f32[8,8], index: 3, kind: input, shape index: {}]
  %s4 = inlined_call_operand.vmem [shape: f32[8,8], index: 4, kind: input, shape index: {}]
  %s5 = inlined_call_operand.vmem [shape: f32[8,8], index: 5, kind: input, shape index: {}]
  %s6 = inlined_call_operand.vmem [shape: f32[64,8], index: 6, kind: output, shape index: {}]
  %s7 = sld [smem:[#allocation0]]
  $region61: #{linear_attention_forward.8} parent=0
    _
  %s9 = ssub.s32 1, %s7
  %s10 = scalar_select 0, %s9, %s7
  loop: start=0, step=1, limit=10
  $region2: #{linear_attention_forward.8} parent=0 // loop_pre_header
    _
  $region3: #{linear_attention_forward.8} parent=0 // loop_header
    %s12 = sphi 0, %s16
    %p13 = scmp.ge.s32.totalorder %s12, 10
    %s19 = sphi 0, %s31
    %s20 = sphi 0, %s27
    %s21 = sphi 0, %s19
    %s22 = sphi 0, %s20
    %s23 = sphi 0, %s21
    %s24 = sphi 0, %s22
    %s36 = sphi 0, %s38
    %s39 = sphi 0, %s36
    %s40 = sphi 0, %s39
    %s56 = sphi 0, %s40
    %s64 = sphi 0, %s66
    %s67 = sphi 0, %s64
    %s68 = sphi 0, %s67
    %s84 = sphi 0, %s68
    %s92 = sphi 0, %s94
    %s95 = sphi 0, %s92
    %s96 = sphi 0, %s95
    %s112 = sphi 0, %s96
    %s116 = sphi 0, %s116
    %s118 = sphi 0, %s116
    %s119 = sphi 0, %s118
    %s133 = sphi 0, %s119
    %s137 = sphi 0, %s137
    %s139 = sphi 0, %s137
    %s140 = sphi 0, %s139
    %s154 = sphi 0, %s140
    %s158 = sphi 0, %s158
    %s160 = sphi 0, %s158
    %s161 = sphi 0, %s160
    %s175 = sphi 0, %s161
    %s183 = sphi 0, %s185
    %s186 = sphi 0, %s183
    %s187 = sphi 0, %s186
    %s203 = sphi 0, %s187
  $region4: #{linear_attention_forward.8} parent=0 // loop_header_branch
    %15 = sbr.rel (%p13) target = $region8
  $region5: #{linear_attention_forward.8} parent=0 // loop_body
    %s17 = ssub.s32 %s12, 1
    %s18 = ssub.s32 %s12, 2
    %s25 = sadd.s32 1, %s20
    %p26 = scmp.ge.s32.totalorder %s25, 1
    %s27 = scalar_select %p26, 0, %s25
    %s28 = sadd.s32 1, %s19
    %s29 = scalar_select %p26, %s28, %s19
    %p30 = scmp.ge.s32.totalorder %s29, 8
    %s31 = scalar_select %p30, 0, %s29
    %s32 = sadd.s32 %s19, %s20
    %s33 = sadd.s32 %s31, %s27
    %s34 = ssub.s32 %s32, %s33
    %p35 = scmp.eq.s32.totalorder %s34, 0
    %s37 = sadd.s32 %s36, 1
    %s38 = scalar_select %p35, %s36, %s37
    %p41 = pneg %p35
    %p42 = scmp.eq.s32.totalorder %s12, 7
    %p43 = por %p41, %p42
    %p44 = scmp.ne.s32.totalorder %s36, %s39
    %p45 = scmp.eq.s32.totalorder %s12, 0
    %p46 = por %p44, %p45
    %p47 = scmp.ne.s32.totalorder %s36, %s39
    %p48 = scmp.eq.s32.totalorder %s17, 7
    %p49 = por %p47, %p48
    %p50 = scmp.ne.s32.totalorder %s39, %s40
    %p51 = scmp.eq.s32.totalorder %s17, 0
    %p52 = por %p50, %p51
    %p53 = scmp.ne.s32.totalorder %s39, %s40
    %p54 = scmp.eq.s32.totalorder %s18, 7
    %p55 = por %p53, %p54
    %p57 = scmp.ne.s32.totalorder %s40, %s56
    %p58 = scmp.eq.s32.totalorder %s18, 0
    %p59 = por %p57, %p58
    %s60 = sadd.s32 %s19, %s20
    %s61 = sadd.s32 %s31, %s27
    %s62 = ssub.s32 %s60, %s61
    %p63 = scmp.eq.s32.totalorder %s62, 0
    %s65 = sadd.s32 %s64, 1
    %s66 = scalar_select %p63, %s64, %s65
    %p69 = pneg %p63
    %p70 = scmp.eq.s32.totalorder %s12, 7
    %p71 = por %p69, %p70
    %p72 = scmp.ne.s32.totalorder %s64, %s67
    %p73 = scmp.eq.s32.totalorder %s12, 0
    %p74 = por %p72, %p73
    %p75 = scmp.ne.s32.totalorder %s64, %s67
    %p76 = scmp.eq.s32.totalorder %s17, 7
    %p77 = por %p75, %p76
    %p78 = scmp.ne.s32.totalorder %s67, %s68
    %p79 = scmp.eq.s32.totalorder %s17, 0
    %p80 = por %p78, %p79
    %p81 = scmp.ne.s32.totalorder %s67, %s68
    %p82 = scmp.eq.s32.totalorder %s18, 7
    %p83 = por %p81, %p82
    %p85 = scmp.ne.s32.totalorder %s68, %s84
    %p86 = scmp.eq.s32.totalorder %s18, 0
    %p87 = por %p85, %p86
    %s88 = sadd.s32 %s19, %s20
    %s89 = sadd.s32 %s31, %s27
    %s90 = ssub.s32 %s88, %s89
    %p91 = scmp.eq.s32.totalorder %s90, 0
    %s93 = sadd.s32 %s92, 1
    %s94 = scalar_select %p91, %s92, %s93
    %p97 = pneg %p91
    %p98 = scmp.eq.s32.totalorder %s12, 7
    %p99 = por %p97, %p98
    %p100 = scmp.ne.s32.totalorder %s92, %s95
    %p101 = scmp.eq.s32.totalorder %s12, 0
    %p102 = por %p100, %p101
    %p103 = scmp.ne.s32.totalorder %s92, %s95
    %p104 = scmp.eq.s32.totalorder %s17, 7
    %p105 = por %p103, %p104
    %p106 = scmp.ne.s32.totalorder %s95, %s96
    %p107 = scmp.eq.s32.totalorder %s17, 0
    %p108 = por %p106, %p107
    %p109 = scmp.ne.s32.totalorder %s95, %s96
    %p110 = scmp.eq.s32.totalorder %s18, 7
    %p111 = por %p109, %p110
    %p113 = scmp.ne.s32.totalorder %s96, %s112
    %p114 = scmp.eq.s32.totalorder %s18, 0
    %p115 = por %p113, %p114
    %s117 = sadd.s32 %s116, 1
    %p120 = scmp.eq.s32.totalorder %s12, 7
    %p121 = scmp.ne.s32.totalorder %s116, %s118
    %p122 = scmp.eq.s32.totalorder %s12, 0
    %p123 = por %p121, %p122
    %p124 = scmp.ne.s32.totalorder %s116, %s118
    %p125 = scmp.eq.s32.totalorder %s17, 7
    %p126 = por %p124, %p125
    %p127 = scmp.ne.s32.totalorder %s118, %s119
    %p128 = scmp.eq.s32.totalorder %s17, 0
    %p129 = por %p127, %p128
    %p130 = scmp.ne.s32.totalorder %s118, %s119
    %p131 = scmp.eq.s32.totalorder %s18, 7
    %p132 = por %p130, %p131
    %p134 = scmp.ne.s32.totalorder %s119, %s133
    %p135 = scmp.eq.s32.totalorder %s18, 0
    %p136 = por %p134, %p135
    %s138 = sadd.s32 %s137, 1
    %p141 = scmp.eq.s32.totalorder %s12, 7
    %p142 = scmp.ne.s32.totalorder %s137, %s139
    %p143 = scmp.eq.s32.totalorder %s12, 0
    %p144 = por %p142, %p143
    %p145 = scmp.ne.s32.totalorder %s137, %s139
    %p146 = scmp.eq.s32.totalorder %s17, 7
    %p147 = por %p145, %p146
    %p148 = scmp.ne.s32.totalorder %s139, %s140
    %p149 = scmp.eq.s32.totalorder %s17, 0
    %p150 = por %p148, %p149
    %p151 = scmp.ne.s32.totalorder %s139, %s140
    %p152 = scmp.eq.s32.totalorder %s18, 7
    %p153 = por %p151, %p152
    %p155 = scmp.ne.s32.totalorder %s140, %s154
    %p156 = scmp.eq.s32.totalorder %s18, 0
    %p157 = por %p155, %p156
    %s159 = sadd.s32 %s158, 1
    %p162 = scmp.eq.s32.totalorder %s12, 7
    %p163 = scmp.ne.s32.totalorder %s158, %s160
    %p164 = scmp.eq.s32.totalorder %s12, 0
    %p165 = por %p163, %p164
    %p166 = scmp.ne.s32.totalorder %s158, %s160
    %p167 = scmp.eq.s32.totalorder %s17, 7
    %p168 = por %p166, %p167
    %p169 = scmp.ne.s32.totalorder %s160, %s161
    %p170 = scmp.eq.s32.totalorder %s17, 0
    %p171 = por %p169, %p170
    %p172 = scmp.ne.s32.totalorder %s160, %s161
    %p173 = scmp.eq.s32.totalorder %s18, 7
    %p174 = por %p172, %p173
    %p176 = scmp.ne.s32.totalorder %s161, %s175
    %p177 = scmp.eq.s32.totalorder %s18, 0
    %p178 = por %p176, %p177
    %s179 = sadd.s32 %s19, %s20
    %s180 = sadd.s32 %s31, %s27
    %s181 = ssub.s32 %s179, %s180
    %p182 = scmp.eq.s32.totalorder %s181, 0
    %s184 = sadd.s32 %s183, 1
    %s185 = scalar_select %p182, %s183, %s184
    %p188 = pneg %p182
    %p189 = scmp.eq.s32.totalorder %s12, 7
    %p190 = por %p188, %p189
    %p191 = scmp.ne.s32.totalorder %s183, %s186
    %p192 = scmp.eq.s32.totalorder %s12, 0
    %p193 = por %p191, %p192
    %p194 = scmp.ne.s32.totalorder %s183, %s186
    %p195 = scmp.eq.s32.totalorder %s17, 7
    %p196 = por %p194, %p195
    %p197 = scmp.ne.s32.totalorder %s186, %s187
    %p198 = scmp.eq.s32.totalorder %s17, 0
    %p199 = por %p197, %p198
    %p200 = scmp.ne.s32.totalorder %s186, %s187
    %p201 = scmp.eq.s32.totalorder %s18, 7
    %p202 = por %p200, %p201
    %p204 = scmp.ne.s32.totalorder %s187, %s203
    %p205 = scmp.eq.s32.totalorder %s18, 0
    %p206 = por %p204, %p205
    %p207 = scmp.le.s32.totalorder 1, %s12
    %p208 = scmp.lt.s32.totalorder %s12, 9
    %p209 = pnand %p207, %p208
    %p210 = pneg %p209
    // Predicated region
    $region9: #{linear_attention_forward.8} parent=5 // pred_check
      _
    $region10: #{linear_attention_forward.8} parent=5 // pred_check_branch
      %212 = sbr.rel (%p209) target = $region12
    $region11: #{linear_attention_forward.8} parent=5 // pred_region
      %s213 = ssub.s32 %s12, 1
      // Predicated region
      $region13: #{linear_attention_forward.8} parent=11 // pred_check
        %p214 = pneg %p129
      $region14: #{linear_attention_forward.8} parent=11 // pred_check_branch
        %216 = sbr.rel (%p214) target = $region16
      $region15: #{linear_attention_forward.8} parent=11 // pred_region
        _
      $region16: #{linear_attention_forward.8} parent=11 // pred_fallthru
        _
      // Predicated region
      $region17: #{linear_attention_forward.8} parent=11 // pred_check
        %p217 = pneg %p150
      $region18: #{linear_attention_forward.8} parent=11 // pred_check_branch
        %219 = sbr.rel (%p217) target = $region20
      $region19: #{linear_attention_forward.8} parent=11 // pred_region
        _
      $region20: #{linear_attention_forward.8} parent=11 // pred_fallthru
        _
      // Predicated region
      $region21: #{linear_attention_forward.8} parent=11 // pred_check
        %p220 = pneg %p171
      $region22: #{linear_attention_forward.8} parent=11 // pred_check_branch
        %222 = sbr.rel (%p220) target = $region24
      $region23: #{linear_attention_forward.8} parent=11 // pred_region
        _
      $region24: #{linear_attention_forward.8} parent=11 // pred_fallthru
        _
    $region12: #{linear_attention_forward.8} parent=5 // pred_fallthru
      _
    %p223 = scmp.lt.s32.totalorder %s12, 8
    // Predicated region
    $region25: #{linear_attention_forward.8} parent=5 // pred_check
      %p224 = pneg %p223
    $region26: #{linear_attention_forward.8} parent=5 // pred_check_branch
      %226 = sbr.rel (%p224) target = $region28
    $region27: #{linear_attention_forward.8} parent=5 // pred_region
      // Predicated region
      $region29: #{linear_attention_forward.8} parent=27 // pred_check
        %p227 = pneg %p46
      $region30: #{linear_attention_forward.8} parent=27 // pred_check_branch
        %229 = sbr.rel (%p227) target = $region32
      $region31: #{linear_attention_forward.8} parent=27 // pred_region
        %s230 = sadd.s32 %s19, %s20
        %p231 = scmp.lt.s32.totalorder %s230, 7
        %s232 = scalar_select %p231, %s230, 7
        %s233 = smul.addr %s232, 8
        %s234 = scalar_lea.vmem %s0, %s233
        %s235 = sadd.s32 %s19, %s20
      $region32: #{linear_attention_forward.8} parent=27 // pred_fallthru
        _
      // Predicated region
      $region33: #{linear_attention_forward.8} parent=27 // pred_check
        %p236 = pneg %p74
      $region34: #{linear_attention_forward.8} parent=27 // pred_check_branch
        %238 = sbr.rel (%p236) target = $region36
      $region35: #{linear_attention_forward.8} parent=27 // pred_region
        %s239 = sadd.s32 %s19, %s20
        %p240 = scmp.lt.s32.totalorder %s239, 7
        %s241 = scalar_select %p240, %s239, 7
        %s242 = smul.addr %s241, 8
        %s243 = scalar_lea.vmem %s1, %s242
        %s244 = sadd.s32 %s19, %s20
      $region36: #{linear_attention_forward.8} parent=27 // pred_fallthru
        _
      // Predicated region
      $region37: #{linear_attention_forward.8} parent=27 // pred_check
        %p245 = pneg %p102
      $region38: #{linear_attention_forward.8} parent=27 // pred_check_branch
        %247 = sbr.rel (%p245) target = $region40
      $region39: #{linear_attention_forward.8} parent=27 // pred_region
        %s248 = sadd.s32 %s19, %s20
        %p249 = scmp.lt.s32.totalorder %s248, 7
        %s250 = scalar_select %p249, %s248, 7
        %s251 = smul.addr %s250, 8
        %s252 = scalar_lea.vmem %s2, %s251
        %s253 = sadd.s32 %s19, %s20
      $region40: #{linear_attention_forward.8} parent=27 // pred_fallthru
        _
    $region28: #{linear_attention_forward.8} parent=5 // pred_fallthru
      _
    %p254 = scmp.le.s32.totalorder 1, %s12
    %p255 = scmp.lt.s32.totalorder %s12, 9
    %p256 = pnand %p254, %p255
    %p257 = pneg %p256
    // Predicated region
    $region41: #{linear_attention_forward.8} parent=5 // pred_check
      _
    $region42: #{linear_attention_forward.8} parent=5 // pred_check_branch
      %259 = sbr.rel (%p256) target = $region44
    $region43: #{linear_attention_forward.8} parent=5 // pred_region
      %s260 = ssub.s32 %s12, 1
      %s261 = sadd.s32 %s21, %s22
      %p262 = scmp.lt.s32.totalorder %s261, 7
      %s263 = scalar_select %p262, %s261, 7
      %s264 = smul.addr %s263, 8
      %s265 = scalar_lea.vmem %s0, %s264
      %p266 = pneg %p52
      %p267 = pneg %p49
      %s268 = sadd.s32 %s21, %s22
      %p269 = scmp.lt.s32.totalorder %s268, 7
      %s270 = scalar_select %p269, %s268, 7
      %s271 = smul.addr %s270, 8
      %s272 = scalar_lea.vmem %s1, %s271
      %p273 = pneg %p80
      %p274 = pneg %p77
      %s275 = sadd.s32 %s21, %s22
      %p276 = scmp.lt.s32.totalorder %s275, 7
      %s277 = scalar_select %p276, %s275, 7
      %s278 = smul.addr %s277, 8
      %s279 = scalar_lea.vmem %s2, %s278
      %p280 = pneg %p108
      %p281 = pneg %p105
      %p282 = pneg %p129
      %p283 = pneg %p126
      %p284 = pneg %p150
      %p285 = pneg %p147
      %p286 = pneg %p171
      %p287 = pneg %p168
      %p288 = pneg %p199
      %p289 = pneg %p196
      %s290 = sadd.s32 %s21, %s22
      %p291 = scmp.lt.s32.totalorder %s290, 7
      %s292 = scalar_select %p291, %s290, 7
      %s293 = smul.addr %s292, 8
      %s294 = scalar_lea.vmem %s6, %s293
      %s295 = sadd.s32 %s21, %s22
      %p296 = scmp.lt.s32.totalorder %s295, 7
      %s297 = scalar_select %p296, %s295, 7
      %s298 = smul.addr %s297, 8
      %s299 = scalar_lea.vmem %s0, %s298
      %s300 = sadd.s32 %s21, %s22
      %s301 = sadd.s32 %s21, %s22
      %p302 = scmp.lt.s32.totalorder %s301, 7
      %s303 = scalar_select %p302, %s301, 7
      %s304 = smul.addr %s303, 8
      %s305 = scalar_lea.vmem %s1, %s304
      %s306 = sadd.s32 %s21, %s22
      %s307 = sadd.s32 %s21, %s22
      %p308 = scmp.lt.s32.totalorder %s307, 7
      %s309 = scalar_select %p308, %s307, 7
      %s310 = smul.addr %s309, 8
      %s311 = scalar_lea.vmem %s2, %s310
      %s312 = sadd.s32 %s21, %s22
      %s313 = sadd.s32 %s21, %s22
      %p314 = scmp.lt.s32.totalorder %s313, 7
      %s315 = scalar_select %p314, %s313, 7
      %s316 = smul.addr %s315, 8
      %s317 = scalar_lea.vmem %s6, %s316
      %s318 = sadd.s32 %s21, %s22
      %p319 = scmp.eq.s32.totalorder %s22, 0
      // Predicated region
      $region45: #{linear_attention_forward.8} parent=43 // pred_check
        %p320 = pneg %p319
      $region46: #{linear_attention_forward.8} parent=43 // pred_check_branch
        %322 = sbr.rel (%p320) target = $region48
      $region47: #{linear_attention_forward.8} parent=43 // pred_region
        %vm323 = vcmask 64512
        %324 = vst.msk [vmem:[#allocation2] sm:$0xff] %vm323, 0.0
      $region48: #{linear_attention_forward.8} parent=43 // pred_fallthru
        _
      %v325 = vlaneseq
      %v326 = vshrl.u32 %v325, 7
      %v327 = vlaneseq
      %v328 = vand.u32 %v327, 127
      %vm329 = vcmp.le.s32.totalorder %v328, %v326
      %s330 = smul.u32 %s22, 8
      %s331 = scalar_lea.vmem %s3, %s330
      %v332 = vld [vmem:[%s331] sm:$0xff]
      %s333 = scalar_lea.vmem %s4, %s330
      %v334 = vld [vmem:[%s333] sm:$0xff]
      %v335 = vld [vmem:[%s299] sm:$0xff]
      %v336 = vld [vmem:[%s305] sm:$0xff]
      %v337 = vld [vmem:[%s311] sm:$0xff]
      %v338 = vld [vmem:[%s5] sm:$0xff]
      %vm339 = vcmask 64512
      %v341 = vsel %vm339, %v335, 0
      %343 = vmatprep.subr.mxu0 0.0
      %344 = vmatpush1.msra.mxu0 %v338
      %345 = vmatprep.subr.mxu0 0.0
      %346 = vmatpush1.msra.mxu0 0.0
      %347 = vmatprep.subr.mxu0 0.0
      %348 = vmatpush1.msra.mxu0 0.0
      %349 = vmatprep.subr.mxu0 0.0
      %350 = vmatpush1.msra.mxu0 0.0
      %351 = vmatprep.subr.mxu0 0.0
      %352 = vmatpush1.msra.mxu0 0.0
      %353 = vmatprep.subr.mxu0 0.0
      %354 = vmatpush1.msra.mxu0 0.0
      %355 = vmatprep.subr.mxu0 0.0
      %356 = vmatpush1.msra.mxu0 0.0
      %357 = vmatprep.subr.mxu0 0.0
      %358 = vmatpush1.msra.mxu0 0.0
      %359 = vmatprep.subr.mxu0 0.0
      %360 = vmatpush1.msra.mxu0 0.0
      %361 = vmatprep.subr.mxu0 0.0
      %362 = vmatpush1.msra.mxu0 0.0
      %363 = vmatprep.subr.mxu0 0.0
      %364 = vmatpush1.msra.mxu0 0.0
      %365 = vmatprep.subr.mxu0 0.0
      %366 = vmatpush1.msra.mxu0 0.0
      %367 = vmatprep.subr.mxu0 0.0
      %368 = vmatpush1.msra.mxu0 0.0
      %369 = vmatprep.subr.mxu0 0.0
      %370 = vmatpush1.msra.mxu0 0.0
      %371 = vmatprep.subr.mxu0 0.0
      %372 = vmatpush1.msra.mxu0 0.0
      %373 = vmatprep.subr.mxu0 0.0
      %374 = vmatpush1.msra.mxu0 0.0
      %375 = vmatprep.subr.mxu0 0.0
      %376 = vmatpush1.msra.mxu0 0.0
      %377 = vmatprep.subr.mxu0 0.0
      %378 = vmatpush1.msra.mxu0 0.0
      %379 = vmatprep.subr.mxu0 0.0
      %380 = vmatpush1.msra.mxu0 0.0
      %381 = vmatprep.subr.mxu0 0.0
      %382 = vmatpush1.msra.mxu0 0.0
      %383 = vmatprep.subr.mxu0 0.0
      %384 = vmatpush1.msra.mxu0 0.0
      %385 = vmatprep.subr.mxu0 0.0
      %386 = vmatpush1.msra.mxu0 0.0
      %387 = vmatprep.subr.mxu0 0.0
      %388 = vmatpush1.msra.mxu0 0.0
      %389 = vmatprep.subr.mxu0 0.0
      %390 = vmatpush1.msra.mxu0 0.0
      %391 = vmatprep.subr.mxu0 0.0
      %392 = vmatpush1.msra.mxu0 0.0
      %393 = vmatprep.subr.mxu0 0.0
      %394 = vmatpush1.msra.mxu0 0.0
      %395 = vmatprep.subr.mxu0 0.0
      %396 = vmatpush1.msra.mxu0 0.0
      %397 = vmatprep.subr.mxu0 0.0
      %398 = vmatpush1.msra.mxu0 0.0
      %399 = vmatprep.subr.mxu0 0.0
      %400 = vmatpush1.msra.mxu0 0.0
      %401 = vmatprep.subr.mxu0 0.0
      %402 = vmatpush1.msra.mxu0 0.0
      %403 = vmatprep.subr.mxu0 0.0
      %404 = vmatpush1.msra.mxu0 0.0
      %405 = vmatprep.subr.mxu0 0.0
      %406 = vmatpush1.msra.mxu0 0.0
      %407 = vmatprep.mubr.f32.mxu0 0.0
      %408 = vmatmul.mubr.f32.gmra.mrb[0].mxu0 %v341
      %v409 = vpop.f32.mrb[0].mxu0
      %v410 = vadd.f32 0.0, %v409
      %v411 = vpop.f32.mrb[0].mxu0
      %412 = vdwg.mxu0
      %v413 = vmul.f32 %v335, %v332
      %v414 = vmul.f32 %v410, %v334
      %v415 = vadd.f32 %v413, %v414
      %v417 = vsel %vm339, %v336, 0
      %419 = vmatprep.subr.mxu0 0.0
      %420 = vmatpush1.msra.mxu0 %v338
      %421 = vmatprep.subr.mxu0 0.0
      %422 = vmatpush1.msra.mxu0 0.0
      %423 = vmatprep.subr.mxu0 0.0
      %424 = vmatpush1.msra.mxu0 0.0
      %425 = vmatprep.subr.mxu0 0.0
      %426 = vmatpush1.msra.mxu0 0.0
      %427 = vmatprep.subr.mxu0 0.0
      %428 = vmatpush1.msra.mxu0 0.0
      %429 = vmatprep.subr.mxu0 0.0
      %430 = vmatpush1.msra.mxu0 0.0
      %431 = vmatprep.subr.mxu0 0.0
      %432 = vmatpush1.msra.mxu0 0.0
      %433 = vmatprep.subr.mxu0 0.0
      %434 = vmatpush1.msra.mxu0 0.0
      %435 = vmatprep.subr.mxu0 0.0
      %436 = vmatpush1.msra.mxu0 0.0
      %437 = vmatprep.subr.mxu0 0.0
      %438 = vmatpush1.msra.mxu0 0.0
      %439 = vmatprep.subr.mxu0 0.0
      %440 = vmatpush1.msra.mxu0 0.0
      %441 = vmatprep.subr.mxu0 0.0
      %442 = vmatpush1.msra.mxu0 0.0
      %443 = vmatprep.subr.mxu0 0.0
      %444 = vmatpush1.msra.mxu0 0.0
      %445 = vmatprep.subr.mxu0 0.0
      %446 = vmatpush1.msra.mxu0 0.0
      %447 = vmatprep.subr.mxu0 0.0
      %448 = vmatpush1.msra.mxu0 0.0
      %449 = vmatprep.subr.mxu0 0.0
      %450 = vmatpush1.msra.mxu0 0.0
      %451 = vmatprep.subr.mxu0 0.0
      %452 = vmatpush1.msra.mxu0 0.0
      %453 = vmatprep.subr.mxu0 0.0
      %454 = vmatpush1.msra.mxu0 0.0
      %455 = vmatprep.subr.mxu0 0.0
      %456 = vmatpush1.msra.mxu0 0.0
      %457 = vmatprep.subr.mxu0 0.0
      %458 = vmatpush1.msra.mxu0 0.0
      %459 = vmatprep.subr.mxu0 0.0
      %460 = vmatpush1.msra.mxu0 0.0
      %461 = vmatprep.subr.mxu0 0.0
      %462 = vmatpush1.msra.mxu0 0.0
      %463 = vmatprep.subr.mxu0 0.0
      %464 = vmatpush1.msra.mxu0 0.0
      %465 = vmatprep.subr.mxu0 0.0
      %466 = vmatpush1.msra.mxu0 0.0
      %467 = vmatprep.subr.mxu0 0.0
      %468 = vmatpush1.msra.mxu0 0.0
      %469 = vmatprep.subr.mxu0 0.0
      %470 = vmatpush1.msra.mxu0 0.0
      %471 = vmatprep.subr.mxu0 0.0
      %472 = vmatpush1.msra.mxu0 0.0
      %473 = vmatprep.subr.mxu0 0.0
      %474 = vmatpush1.msra.mxu0 0.0
      %475 = vmatprep.subr.mxu0 0.0
      %476 = vmatpush1.msra.mxu0 0.0
      %477 = vmatprep.subr.mxu0 0.0
      %478 = vmatpush1.msra.mxu0 0.0
      %479 = vmatprep.subr.mxu0 0.0
      %480 = vmatpush1.msra.mxu0 0.0
      %481 = vmatprep.subr.mxu0 0.0
      %482 = vmatpush1.msra.mxu0 0.0
      %483 = vmatprep.mubr.f32.mxu0 0.0
      %484 = vmatmul.mubr.f32.gmra.mrb[0].mxu0 %v417
      %v485 = vpop.f32.mrb[0].mxu0
      %v486 = vadd.f32 0.0, %v485
      %v487 = vpop.f32.mrb[0].mxu0
      %488 = vdwg.mxu0
      %v489 = vmul.f32 %v336, %v332
      %v490 = vmul.f32 %v486, %v334
      %v491 = vadd.f32 %v489, %v490
      %v492 = vld [vmem:[#allocation2] sm:$0xff]
      %v494 = vsel %vm339, %v415, 0
      %v497 = vsel %vm339, %v491, 0
      %499 = vmatprep.subr.mxu0 0.0
      %500 = vmatpush1.xpose.msra.mxu0 %v497
      %501 = vmatprep.subr.mxu0 0.0
      %502 = vmatpush1.xpose.msra.mxu0 0.0
      %503 = vmatprep.subr.mxu0 0.0
      %504 = vmatpush1.xpose.msra.mxu0 0.0
      %505 = vmatprep.subr.mxu0 0.0
      %506 = vmatpush1.xpose.msra.mxu0 0.0
      %507 = vmatprep.subr.mxu0 0.0
      %508 = vmatpush1.xpose.msra.mxu0 0.0
      %509 = vmatprep.subr.mxu0 0.0
      %510 = vmatpush1.xpose.msra.mxu0 0.0
      %511 = vmatprep.subr.mxu0 0.0
      %512 = vmatpush1.xpose.msra.mxu0 0.0
      %513 = vmatprep.subr.mxu0 0.0
      %514 = vmatpush1.xpose.msra.mxu0 0.0
      %515 = vmatprep.subr.mxu0 0.0
      %516 = vmatpush1.xpose.msra.mxu0 0.0
      %517 = vmatprep.subr.mxu0 0.0
      %518 = vmatpush1.xpose.msra.mxu0 0.0
      %519 = vmatprep.subr.mxu0 0.0
      %520 = vmatpush1.xpose.msra.mxu0 0.0
      %521 = vmatprep.subr.mxu0 0.0
      %522 = vmatpush1.xpose.msra.mxu0 0.0
      %523 = vmatprep.subr.mxu0 0.0
      %524 = vmatpush1.xpose.msra.mxu0 0.0
      %525 = vmatprep.subr.mxu0 0.0
      %526 = vmatpush1.xpose.msra.mxu0 0.0
      %527 = vmatprep.subr.mxu0 0.0
      %528 = vmatpush1.xpose.msra.mxu0 0.0
      %529 = vmatprep.subr.mxu0 0.0
      %530 = vmatpush1.xpose.msra.mxu0 0.0
      %531 = vmatprep.subr.mxu0 0.0
      %532 = vmatpush1.xpose.msra.mxu0 0.0
      %533 = vmatprep.subr.mxu0 0.0
      %534 = vmatpush1.xpose.msra.mxu0 0.0
      %535 = vmatprep.subr.mxu0 0.0
      %536 = vmatpush1.xpose.msra.mxu0 0.0
      %537 = vmatprep.subr.mxu0 0.0
      %538 = vmatpush1.xpose.msra.mxu0 0.0
      %539 = vmatprep.subr.mxu0 0.0
      %540 = vmatpush1.xpose.msra.mxu0 0.0
      %541 = vmatprep.subr.mxu0 0.0
      %542 = vmatpush1.xpose.msra.mxu0 0.0
      %543 = vmatprep.subr.mxu0 0.0
      %544 = vmatpush1.xpose.msra.mxu0 0.0
      %545 = vmatprep.subr.mxu0 0.0
      %546 = vmatpush1.xpose.msra.mxu0 0.0
      %547 = vmatprep.subr.mxu0 0.0
      %548 = vmatpush1.xpose.msra.mxu0 0.0
      %549 = vmatprep.subr.mxu0 0.0
      %550 = vmatpush1.xpose.msra.mxu0 0.0
      %551 = vmatprep.subr.mxu0 0.0
      %552 = vmatpush1.xpose.msra.mxu0 0.0
      %553 = vmatprep.subr.mxu0 0.0
      %554 = vmatpush1.xpose.msra.mxu0 0.0
      %555 = vmatprep.subr.mxu0 0.0
      %556 = vmatpush1.xpose.msra.mxu0 0.0
      %557 = vmatprep.subr.mxu0 0.0
      %558 = vmatpush1.xpose.msra.mxu0 0.0
      %559 = vmatprep.subr.mxu0 0.0
      %560 = vmatpush1.xpose.msra.mxu0 0.0
      %561 = vmatprep.subr.mxu0 0.0
      %562 = vmatpush1.xpose.msra.mxu0 0.0
      %563 = vmatprep.mubr.f32.mxu0 0.0
      %564 = vmatmul.mubr.f32.gmra.mrb[0].mxu0 %v494
      %v565 = vpop.f32.mrb[0].mxu0
      %v566 = vadd.f32 0.0, %v565
      %v567 = vpop.f32.mrb[0].mxu0
      %568 = vdwg.mxu0
      %v569 = vsel %vm329, %v566, 0.0
      %v571 = vsel %vm339, %v569, 0
      %573 = vmatprep.subr.mxu0 0.0
      %574 = vmatpush1.msra.mxu0 %v337
      %575 = vmatprep.subr.mxu0 0.0
      %576 = vmatpush1.msra.mxu0 0.0
      %577 = vmatprep.subr.mxu0 0.0
      %578 = vmatpush1.msra.mxu0 0.0
      %579 = vmatprep.subr.mxu0 0.0
      %580 = vmatpush1.msra.mxu0 0.0
      %581 = vmatprep.subr.mxu0 0.0
      %582 = vmatpush1.msra.mxu0 0.0
      %583 = vmatprep.subr.mxu0 0.0
      %584 = vmatpush1.msra.mxu0 0.0
      %585 = vmatprep.subr.mxu0 0.0
      %586 = vmatpush1.msra.mxu0 0.0
      %587 = vmatprep.subr.mxu0 0.0
      %588 = vmatpush1.msra.mxu0 0.0
      %589 = vmatprep.subr.mxu0 0.0
      %590 = vmatpush1.msra.mxu0 0.0
      %591 = vmatprep.subr.mxu0 0.0
      %592 = vmatpush1.msra.mxu0 0.0
      %593 = vmatprep.subr.mxu0 0.0
      %594 = vmatpush1.msra.mxu0 0.0
      %595 = vmatprep.subr.mxu0 0.0
      %596 = vmatpush1.msra.mxu0 0.0
      %597 = vmatprep.subr.mxu0 0.0
      %598 = vmatpush1.msra.mxu0 0.0
      %599 = vmatprep.subr.mxu0 0.0
      %600 = vmatpush1.msra.mxu0 0.0
      %601 = vmatprep.subr.mxu0 0.0
      %602 = vmatpush1.msra.mxu0 0.0
      %603 = vmatprep.subr.mxu0 0.0
      %604 = vmatpush1.msra.mxu0 0.0
      %605 = vmatprep.subr.mxu0 0.0
      %606 = vmatpush1.msra.mxu0 0.0
      %607 = vmatprep.subr.mxu0 0.0
      %608 = vmatpush1.msra.mxu0 0.0
      %609 = vmatprep.subr.mxu0 0.0
      %610 = vmatpush1.msra.mxu0 0.0
      %611 = vmatprep.subr.mxu0 0.0
      %612 = vmatpush1.msra.mxu0 0.0
      %613 = vmatprep.subr.mxu0 0.0
      %614 = vmatpush1.msra.mxu0 0.0
      %615 = vmatprep.subr.mxu0 0.0
      %616 = vmatpush1.msra.mxu0 0.0
      %617 = vmatprep.subr.mxu0 0.0
      %618 = vmatpush1.msra.mxu0 0.0
      %619 = vmatprep.subr.mxu0 0.0
      %620 = vmatpush1.msra.mxu0 0.0
      %621 = vmatprep.subr.mxu0 0.0
      %622 = vmatpush1.msra.mxu0 0.0
      %623 = vmatprep.subr.mxu0 0.0
      %624 = vmatpush1.msra.mxu0 0.0
      %625 = vmatprep.subr.mxu0 0.0
      %626 = vmatpush1.msra.mxu0 0.0
      %627 = vmatprep.subr.mxu0 0.0
      %628 = vmatpush1.msra.mxu0 0.0
      %629 = vmatprep.subr.mxu0 0.0
      %630 = vmatpush1.msra.mxu0 0.0
      %631 = vmatprep.subr.mxu0 0.0
      %632 = vmatpush1.msra.mxu0 0.0
      %633 = vmatprep.subr.mxu0 0.0
      %634 = vmatpush1.msra.mxu0 0.0
      %635 = vmatprep.subr.mxu0 0.0
      %636 = vmatpush1.msra.mxu0 0.0
      %637 = vmatprep.mubr.f32.mxu0 0.0
      %638 = vmatmul.mubr.f32.gmra.mrb[0].mxu0 %v571
      %v639 = vpop.f32.mrb[0].mxu0
      %v640 = vadd.f32 0.0, %v639
      %v641 = vpop.f32.mrb[0].mxu0
      %642 = vdwg.mxu0
      %643 = vmatprep.subr.mxu0 0.0
      %644 = vmatpush1.msra.mxu0 %v492
      %645 = vmatprep.subr.mxu0 0.0
      %646 = vmatpush1.msra.mxu0 0.0
      %647 = vmatprep.subr.mxu0 0.0
      %648 = vmatpush1.msra.mxu0 0.0
      %649 = vmatprep.subr.mxu0 0.0
      %650 = vmatpush1.msra.mxu0 0.0
      %651 = vmatprep.subr.mxu0 0.0
      %652 = vmatpush1.msra.mxu0 0.0
      %653 = vmatprep.subr.mxu0 0.0
      %654 = vmatpush1.msra.mxu0 0.0
      %655 = vmatprep.subr.mxu0 0.0
      %656 = vmatpush1.msra.mxu0 0.0
      %657 = vmatprep.subr.mxu0 0.0
      %658 = vmatpush1.msra.mxu0 0.0
      %659 = vmatprep.subr.mxu0 0.0
      %660 = vmatpush1.msra.mxu0 0.0
      %661 = vmatprep.subr.mxu0 0.0
      %662 = vmatpush1.msra.mxu0 0.0
      %663 = vmatprep.subr.mxu0 0.0
      %664 = vmatpush1.msra.mxu0 0.0
      %665 = vmatprep.subr.mxu0 0.0
      %666 = vmatpush1.msra.mxu0 0.0
      %667 = vmatprep.subr.mxu0 0.0
      %668 = vmatpush1.msra.mxu0 0.0
      %669 = vmatprep.subr.mxu0 0.0
      %670 = vmatpush1.msra.mxu0 0.0
      %671 = vmatprep.subr.mxu0 0.0
      %672 = vmatpush1.msra.mxu0 0.0
      %673 = vmatprep.subr.mxu0 0.0
      %674 = vmatpush1.msra.mxu0 0.0
      %675 = vmatprep.subr.mxu0 0.0
      %676 = vmatpush1.msra.mxu0 0.0
      %677 = vmatprep.subr.mxu0 0.0
      %678 = vmatpush1.msra.mxu0 0.0
      %679 = vmatprep.subr.mxu0 0.0
      %680 = vmatpush1.msra.mxu0 0.0
      %681 = vmatprep.subr.mxu0 0.0
      %682 = vmatpush1.msra.mxu0 0.0
      %683 = vmatprep.subr.mxu0 0.0
      %684 = vmatpush1.msra.mxu0 0.0
      %685 = vmatprep.subr.mxu0 0.0
      %686 = vmatpush1.msra.mxu0 0.0
      %687 = vmatprep.subr.mxu0 0.0
      %688 = vmatpush1.msra.mxu0 0.0
      %689 = vmatprep.subr.mxu0 0.0
      %690 = vmatpush1.msra.mxu0 0.0
      %691 = vmatprep.subr.mxu0 0.0
      %692 = vmatpush1.msra.mxu0 0.0
      %693 = vmatprep.subr.mxu0 0.0
      %694 = vmatpush1.msra.mxu0 0.0
      %695 = vmatprep.subr.mxu0 0.0
      %696 = vmatpush1.msra.mxu0 0.0
      %697 = vmatprep.subr.mxu0 0.0
      %698 = vmatpush1.msra.mxu0 0.0
      %699 = vmatprep.subr.mxu0 0.0
      %700 = vmatpush1.msra.mxu0 0.0
      %701 = vmatprep.subr.mxu0 0.0
      %702 = vmatpush1.msra.mxu0 0.0
      %703 = vmatprep.subr.mxu0 0.0
      %704 = vmatpush1.msra.mxu0 0.0
      %705 = vmatprep.subr.mxu0 0.0
      %706 = vmatpush1.msra.mxu0 0.0
      %707 = vmatprep.mubr.f32.mxu0 0.0
      %708 = vmatmul.mubr.f32.gmra.mrb[0].mxu0 %v494
      %v709 = vpop.f32.mrb[0].mxu0
      %v710 = vadd.f32 %v640, %v709
      %v711 = vpop.f32.mrb[0].mxu0
      %712 = vdwg.mxu0
      %713 = vst.msk [vmem:[%s317] sm:$0xff] %vm339, %v710
      %714 = vxpose.xlu0.b32.start [1/16] %v491, 128
      %715 = vxpose.xlu0.b32.cont [2/16] 0.0, 128
      %716 = vxpose.xlu0.b32.cont [3/16] 0.0, 128
      %717 = vxpose.xlu0.b32.cont [4/16] 0.0, 128
      %718 = vxpose.xlu0.b32.cont [5/16] 0.0, 128
      %719 = vxpose.xlu0.b32.cont [6/16] 0.0, 128
      %720 = vxpose.xlu0.b32.cont [7/16] 0.0, 128
      %721 = vxpose.xlu0.b32.cont [8/16] 0.0, 128
      %722 = vxpose.xlu0.b32.cont [9/16] 0.0, 128
      %723 = vxpose.xlu0.b32.cont [10/16] 0.0, 128
      %724 = vxpose.xlu0.b32.cont [11/16] 0.0, 128
      %725 = vxpose.xlu0.b32.cont [12/16] 0.0, 128
      %726 = vxpose.xlu0.b32.cont [13/16] 0.0, 128
      %727 = vxpose.xlu0.b32.cont [14/16] 0.0, 128
      %728 = vxpose.xlu0.b32.cont [15/16] 0.0, 128
      %729 = vxpose.xlu0.b32.end [16/16] 0.0, 128
      %v730 = vpop.trf.xlu0
      %v731 = vpop.trf.xlu0
      %v732 = vpop.trf.xlu0
      %v733 = vpop.trf.xlu0
      %v734 = vpop.trf.xlu0
      %v735 = vpop.trf.xlu0
      %v736 = vpop.trf.xlu0
      %v737 = vpop.trf.xlu0
      %v738 = vpop.trf.xlu0
      %v739 = vpop.trf.xlu0
      %v740 = vpop.trf.xlu0
      %v741 = vpop.trf.xlu0
      %v742 = vpop.trf.xlu0
      %v743 = vpop.trf.xlu0
      %v744 = vpop.trf.xlu0
      %v745 = vpop.trf.xlu0
      %v747 = vsel %vm339, %v730, 0
      %749 = vmatprep.subr.mxu0 0.0
      %750 = vmatpush1.msra.mxu0 %v337
      %751 = vmatprep.subr.mxu0 0.0
      %752 = vmatpush1.msra.mxu0 0.0
      %753 = vmatprep.subr.mxu0 0.0
      %754 = vmatpush1.msra.mxu0 0.0
      %755 = vmatprep.subr.mxu0 0.0
      %756 = vmatpush1.msra.mxu0 0.0
      %757 = vmatprep.subr.mxu0 0.0
      %758 = vmatpush1.msra.mxu0 0.0
      %759 = vmatprep.subr.mxu0 0.0
      %760 = vmatpush1.msra.mxu0 0.0
      %761 = vmatprep.subr.mxu0 0.0
      %762 = vmatpush1.msra.mxu0 0.0
      %763 = vmatprep.subr.mxu0 0.0
      %764 = vmatpush1.msra.mxu0 0.0
      %765 = vmatprep.subr.mxu0 0.0
      %766 = vmatpush1.msra.mxu0 0.0
      %767 = vmatprep.subr.mxu0 0.0
      %768 = vmatpush1.msra.mxu0 0.0
      %769 = vmatprep.subr.mxu0 0.0
      %770 = vmatpush1.msra.mxu0 0.0
      %771 = vmatprep.subr.mxu0 0.0
      %772 = vmatpush1.msra.mxu0 0.0
      %773 = vmatprep.subr.mxu0 0.0
      %774 = vmatpush1.msra.mxu0 0.0
      %775 = vmatprep.subr.mxu0 0.0
      %776 = vmatpush1.msra.mxu0 0.0
      %777 = vmatprep.subr.mxu0 0.0
      %778 = vmatpush1.msra.mxu0 0.0
      %779 = vmatprep.subr.mxu0 0.0
      %780 = vmatpush1.msra.mxu0 0.0
      %781 = vmatprep.subr.mxu0 0.0
      %782 = vmatpush1.msra.mxu0 0.0
      %783 = vmatprep.subr.mxu0 0.0
      %784 = vmatpush1.msra.mxu0 0.0
      %785 = vmatprep.subr.mxu0 0.0
      %786 = vmatpush1.msra.mxu0 0.0
      %787 = vmatprep.subr.mxu0 0.0
      %788 = vmatpush1.msra.mxu0 0.0
      %789 = vmatprep.subr.mxu0 0.0
      %790 = vmatpush1.msra.mxu0 0.0
      %791 = vmatprep.subr.mxu0 0.0
      %792 = vmatpush1.msra.mxu0 0.0
      %793 = vmatprep.subr.mxu0 0.0
      %794 = vmatpush1.msra.mxu0 0.0
      %795 = vmatprep.subr.mxu0 0.0
      %796 = vmatpush1.msra.mxu0 0.0
      %797 = vmatprep.subr.mxu0 0.0
      %798 = vmatpush1.msra.mxu0 0.0
      %799 = vmatprep.subr.mxu0 0.0
      %800 = vmatpush1.msra.mxu0 0.0
      %801 = vmatprep.subr.mxu0 0.0
      %802 = vmatpush1.msra.mxu0 0.0
      %803 = vmatprep.subr.mxu0 0.0
      %804 = vmatpush1.msra.mxu0 0.0
      %805 = vmatprep.subr.mxu0 0.0
      %806 = vmatpush1.msra.mxu0 0.0
      %807 = vmatprep.subr.mxu0 0.0
      %808 = vmatpush1.msra.mxu0 0.0
      %809 = vmatprep.subr.mxu0 0.0
      %810 = vmatpush1.msra.mxu0 0.0
      %811 = vmatprep.subr.mxu0 0.0
      %812 = vmatpush1.msra.mxu0 0.0
      %813 = vmatprep.mubr.f32.mxu0 0.0
      %814 = vmatmul.mubr.f32.gmra.mrb[0].mxu0 %v747
      %v815 = vpop.f32.mrb[0].mxu0
      %v816 = vadd.f32 0.0, %v815
      %v817 = vpop.f32.mrb[0].mxu0
      %818 = vdwg.mxu0
      %v819 = vadd.f32 %v492, %v816
      %820 = vst.msk [vmem:[#allocation2] sm:$0xff] %vm339, %v819
      %s821 = sadd.s32 %s21, %s22
      %p822 = scmp.lt.s32.totalorder %s821, 7
      %s823 = scalar_select %p822, %s821, 7
      %s824 = smul.addr %s823, 8
      %s825 = scalar_lea.vmem %s6, %s824
      // Predicated region
      $region49: #{linear_attention_forward.8} parent=43 // pred_check
        %p826 = pneg %p196
      $region50: #{linear_attention_forward.8} parent=43 // pred_check_branch
        %828 = sbr.rel (%p826) target = $region52
      $region51: #{linear_attention_forward.8} parent=43 // pred_region
        %s829 = sadd.s32 %s21, %s22
      $region52: #{linear_attention_forward.8} parent=43 // pred_fallthru
        _
    $region44: #{linear_attention_forward.8} parent=5 // pred_fallthru
      _
    %p830 = scmp.le.s32.totalorder 2, %s12
    // Predicated region
    $region53: #{linear_attention_forward.8} parent=5 // pred_check
      %p831 = pneg %p830
    $region54: #{linear_attention_forward.8} parent=5 // pred_check_branch
      %833 = sbr.rel (%p831) target = $region56
    $region55: #{linear_attention_forward.8} parent=5 // pred_region
      %s834 = ssub.s32 %s12, 2
      // Predicated region
      $region57: #{linear_attention_forward.8} parent=55 // pred_check
        %p835 = pneg %p202
      $region58: #{linear_attention_forward.8} parent=55 // pred_check_branch
        %837 = sbr.rel (%p835) target = $region60
      $region59: #{linear_attention_forward.8} parent=55 // pred_region
        %s838 = sadd.s32 %s23, %s24
        %p839 = scmp.lt.s32.totalorder %s838, 7
        %s840 = scalar_select %p839, %s838, 7
        %s841 = smul.addr %s840, 8
        %s842 = scalar_lea.vmem %s6, %s841
      $region60: #{linear_attention_forward.8} parent=55 // pred_fallthru
        _
    $region56: #{linear_attention_forward.8} parent=5 // pred_fallthru
      _
  $region6: #{linear_attention_forward.8} parent=0 // loop_footer
    %s16 = sadd.s32 1, %s12
  $region7: #{linear_attention_forward.8} parent=0 // loop_footer_branch
    %11 = sbr.rel target = $region3
  $region8: #{linear_attention_forward.8} parent=0 // loop_exit
    _

// kernel: linear_attention_forward.9
$region0: #{linear_attention_forward.9}
  #allocation0 [shape = 'u32[]', space=smem, size = 0x4, offset = 0x4, fixed_abs, tag = 'smem constant byte address 0x4 - core index']
  #allocation1 [shape = 'u32[144,128]{1,0:T(1,128)}', space=vmem, size = 0x12000, scoped, tag = 'internal scratch']
  #allocation2 [shape = 'f32[16,32]{1,0:T(8,128)}', space=vmem, size = 0x2000, scoped, tag = 'scratch operand']
  #allocation3 [shape = 'f32[16,8]{1,0:T(8,128)}', space=vmem, size = 0x2000, scoped, tag = 'scratch operand']
  %s0 = inlined_call_operand.vmem [shape: f32[16,32], index: 0, kind: input, shape index: {}]
  %s1 = inlined_call_operand.vmem [shape: f32[16,32], index: 1, kind: input, shape index: {}]
  %s2 = inlined_call_operand.vmem [shape: f32[32,32], index: 2, kind: input, shape index: {}]
  %s3 = inlined_call_operand.vmem [shape: f32[32,8], index: 3, kind: input, shape index: {}]
  %s4 = inlined_call_operand.vmem [shape: f32[8,32], index: 4, kind: input, shape index: {}]
  %s5 = inlined_call_operand.vmem [shape: f32[1,32], index: 5, kind: input, shape index: {}]
  %s6 = inlined_call_operand.vmem [shape: f32[1,32], index: 6, kind: input, shape index: {}]
  %s7 = inlined_call_operand.hbm [shape: f32[16,32], index: 7, kind: output, shape index: {}]
  %s8 = sld [smem:[#allocation0]]
  $region46: #{linear_attention_forward.9} parent=0
    _
  %s10 = ssub.s32 1, %s8
  %s11 = scalar_select 0, %s10, %s8
  $region1: #{linear_attention_forward.9} parent=0
    #allocation4 [shape = 'u8[8192]{0}', space=vmem, size = 0x2000, scoped, tag = 'output window, operand 0, single buffered']
    #allocation5 [shape = 's32[1]{0}', space=sflag, size = 0x4, scoped, tag = 'scoped memory for linear_attention_forward.9']
    %12 = vsyncpa [#allocation5], 0
    // Predicated region
    $region2: #{linear_attention_forward.9} parent=1 // pred_check
      _
    $region3: #{linear_attention_forward.9} parent=1 // pred_check_branch
      %14 = sbr.rel (0) target = $region5
    $region4: #{linear_attention_forward.9} parent=1 // pred_region
      _
    $region5: #{linear_attention_forward.9} parent=1 // pred_fallthru
      _
    // Predicated region
    $region6: #{linear_attention_forward.9} parent=1 // pred_check
      _
    $region7: #{linear_attention_forward.9} parent=1 // pred_check_branch
      %16 = sbr.rel (0) target = $region9
    $region8: #{linear_attention_forward.9} parent=1 // pred_region
      _
    $region9: #{linear_attention_forward.9} parent=1 // pred_fallthru
      _
    // Predicated region
    $region10: #{linear_attention_forward.9} parent=1 // pred_check
      _
    $region11: #{linear_attention_forward.9} parent=1 // pred_check_branch
      %18 = sbr.rel (0) target = $region13
    $region12: #{linear_attention_forward.9} parent=1 // pred_region
      _
    $region13: #{linear_attention_forward.9} parent=1 // pred_fallthru
      _
    // Predicated region
    $region14: #{linear_attention_forward.9} parent=1 // pred_check
      _
    $region15: #{linear_attention_forward.9} parent=1 // pred_check_branch
      %20 = sbr.rel (0) target = $region17
    $region16: #{linear_attention_forward.9} parent=1 // pred_region
      _
    $region17: #{linear_attention_forward.9} parent=1 // pred_fallthru
      _
    // Predicated region
    $region18: #{linear_attention_forward.9} parent=1 // pred_check
      _
    $region19: #{linear_attention_forward.9} parent=1 // pred_check_branch
      %22 = sbr.rel (0) target = $region21
    $region20: #{linear_attention_forward.9} parent=1 // pred_region
      _
    $region21: #{linear_attention_forward.9} parent=1 // pred_fallthru
      _
    // Predicated region
    $region22: #{linear_attention_forward.9} parent=1 // pred_check
      _
    $region23: #{linear_attention_forward.9} parent=1 // pred_check_branch
      %24 = sbr.rel (0) target = $region25
    $region24: #{linear_attention_forward.9} parent=1 // pred_region
      _
    $region25: #{linear_attention_forward.9} parent=1 // pred_fallthru
      _
    // Predicated region
    $region26: #{linear_attention_forward.9} parent=1 // pred_check
      _
    $region27: #{linear_attention_forward.9} parent=1 // pred_check_branch
      %26 = sbr.rel (0) target = $region29
    $region28: #{linear_attention_forward.9} parent=1 // pred_region
      _
    $region29: #{linear_attention_forward.9} parent=1 // pred_fallthru
      _
    %p27 = scmp.eq.s32.totalorder 0, 0
    // Predicated region
    $region30: #{linear_attention_forward.9} parent=1 // pred_check
      %p28 = pneg %p27
    $region31: #{linear_attention_forward.9} parent=1 // pred_check_branch
      %30 = sbr.rel (%p28) target = $region33
    $region32: #{linear_attention_forward.9} parent=1 // pred_region
      %vm31 = vcmask 261120
      %32 = vst.msk [vmem:[#allocation2] sm:$0xff] %vm31, 0.0
      %33 = vst.msk [vmem:[#allocation2 + $0x8] sm:$0xff] %vm31, 0.0
      %vm34 = vcmask 64512
      %35 = vst.msk [vmem:[#allocation3] sm:$0xff] %vm34, 0.0
      %36 = vst.msk [vmem:[#allocation3 + $0x8] sm:$0xff] %vm34, 0.0
    $region33: #{linear_attention_forward.9} parent=1 // pred_fallthru
      _
    %v37 = vld [vmem:[#allocation2] sm:$0xff]
    %v38 = vld [vmem:[#allocation2 + $0x8] sm:$0xff]
    %v39 = vld [vmem:[%s0] sm:$0xff]
    %v40 = vld [vmem:[%s0 + $0x8] sm:$0xff]
    %v41 = vld [vmem:[%s2] sm:$0xff]
    %v42 = vld [vmem:[%s2 + $0x8] sm:$0xff]
    %v43 = vld [vmem:[%s2 + $0x10] sm:$0xff]
    %v44 = vld [vmem:[%s2 + $0x18] sm:$0xff]
    %vm45 = vcmask 261120
    %v47 = vsel %vm45, %v39, 0
    %v50 = vsel %vm45, %v40, 0
    %52 = vmatprep.subr.mxu0 0.0
    %53 = vmatpush1.msra.mxu0 %v41
    %54 = vmatprep.subr.mxu0 0.0
    %55 = vmatpush1.msra.mxu0 %v42
    %56 = vmatprep.subr.mxu0 0.0
    %57 = vmatpush1.msra.mxu0 %v43
    %58 = vmatprep.subr.mxu0 0.0
    %59 = vmatpush1.msra.mxu0 %v44
    %60 = vmatprep.subr.mxu0 0.0
    %61 = vmatpush1.msra.mxu0 0.0
    %62 = vmatprep.subr.mxu0 0.0
    %63 = vmatpush1.msra.mxu0 0.0
    %64 = vmatprep.subr.mxu0 0.0
    %65 = vmatpush1.msra.mxu0 0.0
    %66 = vmatprep.subr.mxu0 0.0
    %67 = vmatpush1.msra.mxu0 0.0
    %68 = vmatprep.subr.mxu0 0.0
    %69 = vmatpush1.msra.mxu0 0.0
    %70 = vmatprep.subr.mxu0 0.0
    %71 = vmatpush1.msra.mxu0 0.0
    %72 = vmatprep.subr.mxu0 0.0
    %73 = vmatpush1.msra.mxu0 0.0
    %74 = vmatprep.subr.mxu0 0.0
    %75 = vmatpush1.msra.mxu0 0.0
    %76 = vmatprep.subr.mxu0 0.0
    %77 = vmatpush1.msra.mxu0 0.0
    %78 = vmatprep.subr.mxu0 0.0
    %79 = vmatpush1.msra.mxu0 0.0
    %80 = vmatprep.subr.mxu0 0.0
    %81 = vmatpush1.msra.mxu0 0.0
    %82 = vmatprep.subr.mxu0 0.0
    %83 = vmatpush1.msra.mxu0 0.0
    %84 = vmatprep.subr.mxu0 0.0
    %85 = vmatpush1.msra.mxu0 0.0
    %86 = vmatprep.subr.mxu0 0.0
    %87 = vmatpush1.msra.mxu0 0.0
    %88 = vmatprep.subr.mxu0 0.0
    %89 = vmatpush1.msra.mxu0 0.0
    %90 = vmatprep.subr.mxu0 0.0
    %91 = vmatpush1.msra.mxu0 0.0
    %92 = vmatprep.subr.mxu0 0.0
    %93 = vmatpush1.msra.mxu0 0.0
    %94 = vmatprep.subr.mxu0 0.0
    %95 = vmatpush1.msra.mxu0 0.0
    %96 = vmatprep.subr.mxu0 0.0
    %97 = vmatpush1.msra.mxu0 0.0
    %98 = vmatprep.subr.mxu0 0.0
    %99 = vmatpush1.msra.mxu0 0.0
    %100 = vmatprep.subr.mxu0 0.0
    %101 = vmatpush1.msra.mxu0 0.0
    %102 = vmatprep.subr.mxu0 0.0
    %103 = vmatpush1.msra.mxu0 0.0
    %104 = vmatprep.subr.mxu0 0.0
    %105 = vmatpush1.msra.mxu0 0.0
    %106 = vmatprep.subr.mxu0 0.0
    %107 = vmatpush1.msra.mxu0 0.0
    %108 = vmatprep.subr.mxu0 0.0
    %109 = vmatpush1.msra.mxu0 0.0
    %110 = vmatprep.subr.mxu0 0.0
    %111 = vmatpush1.msra.mxu0 0.0
    %112 = vmatprep.subr.mxu0 0.0
    %113 = vmatpush1.msra.mxu0 0.0
    %114 = vmatprep.subr.mxu0 0.0
    %115 = vmatpush1.msra.mxu0 0.0
    %116 = vmatprep.mubr.f32.mxu0 0.0
    %117 = vmatmul.mubr.f32.gmra.mrb[0].mxu0 %v47
    %v118 = vpop.f32.mrb[0].mxu0
    %v119 = vadd.f32 0.0, %v118
    %v120 = vpop.f32.mrb[0].mxu0
    %121 = vmatprep.mubr.f32.mxu0 0.0
    %122 = vmatmul.mubr.f32.gmra.mrb[0].mxu0 %v50
    %v123 = vpop.f32.mrb[0].mxu0
    %v124 = vadd.f32 0.0, %v123
    %v125 = vpop.f32.mrb[0].mxu0
    %126 = vdwg.mxu0
    %v127 = vadd.f32 %v37, %v119
    %v128 = vadd.f32 %v38, %v124
    %129 = vst.msk [vmem:[#allocation2] sm:$0xff] %vm45, %v127
    %130 = vst.msk [vmem:[#allocation2 + $0x8] sm:$0xff] %vm45, %v128
    %v131 = vld [vmem:[#allocation3] sm:$0xff]
    %v132 = vld [vmem:[#allocation3 + $0x8] sm:$0xff]
    %v133 = vld [vmem:[%s1] sm:$0xff]
    %v134 = vld [vmem:[%s1 + $0x8] sm:$0xff]
    %v135 = vld [vmem:[%s3] sm:$0xff]
    %v136 = vld [vmem:[%s3 + $0x8] sm:$0xff]
    %v137 = vld [vmem:[%s3 + $0x10] sm:$0xff]
    %v138 = vld [vmem:[%s3 + $0x18] sm:$0xff]
    %v140 = vsel %vm45, %v133, 0
    %v143 = vsel %vm45, %v134, 0
    %145 = vmatprep.subr.mxu0 0.0
    %146 = vmatpush1.msra.mxu0 %v135
    %147 = vmatprep.subr.mxu0 0.0
    %148 = vmatpush1.msra.mxu0 %v136
    %149 = vmatprep.subr.mxu0 0.0
    %150 = vmatpush1.msra.mxu0 %v137
    %151 = vmatprep.subr.mxu0 0.0
    %152 = vmatpush1.msra.mxu0 %v138
    %153 = vmatprep.subr.mxu0 0.0
    %154 = vmatpush1.msra.mxu0 0.0
    %155 = vmatprep.subr.mxu0 0.0
    %156 = vmatpush1.msra.mxu0 0.0
    %157 = vmatprep.subr.mxu0 0.0
    %158 = vmatpush1.msra.mxu0 0.0
    %159 = vmatprep.subr.mxu0 0.0
    %160 = vmatpush1.msra.mxu0 0.0
    %161 = vmatprep.subr.mxu0 0.0
    %162 = vmatpush1.msra.mxu0 0.0
    %163 = vmatprep.subr.mxu0 0.0
    %164 = vmatpush1.msra.mxu0 0.0
    %165 = vmatprep.subr.mxu0 0.0
    %166 = vmatpush1.msra.mxu0 0.0
    %167 = vmatprep.subr.mxu0 0.0
    %168 = vmatpush1.msra.mxu0 0.0
    %169 = vmatprep.subr.mxu0 0.0
    %170 = vmatpush1.msra.mxu0 0.0
    %171 = vmatprep.subr.mxu0 0.0
    %172 = vmatpush1.msra.mxu0 0.0
    %173 = vmatprep.subr.mxu0 0.0
    %174 = vmatpush1.msra.mxu0 0.0
    %175 = vmatprep.subr.mxu0 0.0
    %176 = vmatpush1.msra.mxu0 0.0
    %177 = vmatprep.subr.mxu0 0.0
    %178 = vmatpush1.msra.mxu0 0.0
    %179 = vmatprep.subr.mxu0 0.0
    %180 = vmatpush1.msra.mxu0 0.0
    %181 = vmatprep.subr.mxu0 0.0
    %182 = vmatpush1.msra.mxu0 0.0
    %183 = vmatprep.subr.mxu0 0.0
    %184 = vmatpush1.msra.mxu0 0.0
    %185 = vmatprep.subr.mxu0 0.0
    %186 = vmatpush1.msra.mxu0 0.0
    %187 = vmatprep.subr.mxu0 0.0
    %188 = vmatpush1.msra.mxu0 0.0
    %189 = vmatprep.subr.mxu0 0.0
    %190 = vmatpush1.msra.mxu0 0.0
    %191 = vmatprep.subr.mxu0 0.0
    %192 = vmatpush1.msra.mxu0 0.0
    %193 = vmatprep.subr.mxu0 0.0
    %194 = vmatpush1.msra.mxu0 0.0
    %195 = vmatprep.subr.mxu0 0.0
    %196 = vmatpush1.msra.mxu0 0.0
    %197 = vmatprep.subr.mxu0 0.0
    %198 = vmatpush1.msra.mxu0 0.0
    %199 = vmatprep.subr.mxu0 0.0
    %200 = vmatpush1.msra.mxu0 0.0
    %201 = vmatprep.subr.mxu0 0.0
    %202 = vmatpush1.msra.mxu0 0.0
    %203 = vmatprep.subr.mxu0 0.0
    %204 = vmatpush1.msra.mxu0 0.0
    %205 = vmatprep.subr.mxu0 0.0
    %206 = vmatpush1.msra.mxu0 0.0
    %207 = vmatprep.subr.mxu0 0.0
    %208 = vmatpush1.msra.mxu0 0.0
    %209 = vmatprep.mubr.f32.mxu0 0.0
    %210 = vmatmul.mubr.f32.gmra.mrb[0].mxu0 %v140
    %v211 = vpop.f32.mrb[0].mxu0
    %v212 = vadd.f32 0.0, %v211
    %v213 = vpop.f32.mrb[0].mxu0
    %214 = vmatprep.mubr.f32.mxu0 0.0
    %215 = vmatmul.mubr.f32.gmra.mrb[0].mxu0 %v143
    %v216 = vpop.f32.mrb[0].mxu0
    %v217 = vadd.f32 0.0, %v216
    %v218 = vpop.f32.mrb[0].mxu0
    %219 = vdwg.mxu0
    %v220 = vadd.f32 %v131, %v212
    %v221 = vadd.f32 %v132, %v217
    %vm222 = vcmask 64512
    %223 = vst.msk [vmem:[#allocation3] sm:$0xff] %vm222, %v220
    %224 = vst.msk [vmem:[#allocation3 + $0x8] sm:$0xff] %vm222, %v221
    // Predicated region
    $region34: #{linear_attention_forward.9} parent=1 // pred_check
      %p225 = pneg %p27
    $region35: #{linear_attention_forward.9} parent=1 // pred_check_branch
      %227 = sbr.rel (%p225) target = $region37
    $region36: #{linear_attention_forward.9} parent=1 // pred_region
      %v228 = vld [vmem:[#allocation3] sm:$0xff]
      %v229 = vld [vmem:[#allocation3 + $0x8] sm:$0xff]
      %v230 = vld [vmem:[%s4] sm:$0xff]
      %v232 = vsel %vm222, %v228, 0
      %v235 = vsel %vm222, %v229, 0
      %237 = vmatprep.subr.mxu0 0.0
      %238 = vmatpush1.msra.mxu0 %v230
      %239 = vmatprep.subr.mxu0 0.0
      %240 = vmatpush1.msra.mxu0 0.0
      %241 = vmatprep.subr.mxu0 0.0
      %242 = vmatpush1.msra.mxu0 0.0
      %243 = vmatprep.subr.mxu0 0.0
      %244 = vmatpush1.msra.mxu0 0.0
      %245 = vmatprep.subr.mxu0 0.0
      %246 = vmatpush1.msra.mxu0 0.0
      %247 = vmatprep.subr.mxu0 0.0
      %248 = vmatpush1.msra.mxu0 0.0
      %249 = vmatprep.subr.mxu0 0.0
      %250 = vmatpush1.msra.mxu0 0.0
      %251 = vmatprep.subr.mxu0 0.0
      %252 = vmatpush1.msra.mxu0 0.0
      %253 = vmatprep.subr.mxu0 0.0
      %254 = vmatpush1.msra.mxu0 0.0
      %255 = vmatprep.subr.mxu0 0.0
      %256 = vmatpush1.msra.mxu0 0.0
      %257 = vmatprep.subr.mxu0 0.0
      %258 = vmatpush1.msra.mxu0 0.0
      %259 = vmatprep.subr.mxu0 0.0
      %260 = vmatpush1.msra.mxu0 0.0
      %261 = vmatprep.subr.mxu0 0.0
      %262 = vmatpush1.msra.mxu0 0.0
      %263 = vmatprep.subr.mxu0 0.0
      %264 = vmatpush1.msra.mxu0 0.0
      %265 = vmatprep.subr.mxu0 0.0
      %266 = vmatpush1.msra.mxu0 0.0
      %267 = vmatprep.subr.mxu0 0.0
      %268 = vmatpush1.msra.mxu0 0.0
      %269 = vmatprep.subr.mxu0 0.0
      %270 = vmatpush1.msra.mxu0 0.0
      %271 = vmatprep.subr.mxu0 0.0
      %272 = vmatpush1.msra.mxu0 0.0
      %273 = vmatprep.subr.mxu0 0.0
      %274 = vmatpush1.msra.mxu0 0.0
      %275 = vmatprep.subr.mxu0 0.0
      %276 = vmatpush1.msra.mxu0 0.0
      %277 = vmatprep.subr.mxu0 0.0
      %278 = vmatpush1.msra.mxu0 0.0
      %279 = vmatprep.subr.mxu0 0.0
      %280 = vmatpush1.msra.mxu0 0.0
      %281 = vmatprep.subr.mxu0 0.0
      %282 = vmatpush1.msra.mxu0 0.0
      %283 = vmatprep.subr.mxu0 0.0
      %284 = vmatpush1.msra.mxu0 0.0
      %285 = vmatprep.subr.mxu0 0.0
      %286 = vmatpush1.msra.mxu0 0.0
      %287 = vmatprep.subr.mxu0 0.0
      %288 = vmatpush1.msra.mxu0 0.0
      %289 = vmatprep.subr.mxu0 0.0
      %290 = vmatpush1.msra.mxu0 0.0
      %291 = vmatprep.subr.mxu0 0.0
      %292 = vmatpush1.msra.mxu0 0.0
      %293 = vmatprep.subr.mxu0 0.0
      %294 = vmatpush1.msra.mxu0 0.0
      %295 = vmatprep.subr.mxu0 0.0
      %296 = vmatpush1.msra.mxu0 0.0
      %297 = vmatprep.subr.mxu0 0.0
      %298 = vmatpush1.msra.mxu0 0.0
      %299 = vmatprep.subr.mxu0 0.0
      %300 = vmatpush1.msra.mxu0 0.0
      %301 = vmatprep.mubr.f32.mxu0 0.0
      %302 = vmatmul.mubr.f32.gmra.mrb[0].mxu0 %v232
      %v303 = vpop.f32.mrb[0].mxu0
      %v304 = vadd.f32 0.0, %v303
      %v305 = vpop.f32.mrb[0].mxu0
      %306 = vmatprep.mubr.f32.mxu0 0.0
      %307 = vmatmul.mubr.f32.gmra.mrb[0].mxu0 %v235
      %v308 = vpop.f32.mrb[0].mxu0
      %v309 = vadd.f32 0.0, %v308
      %v310 = vpop.f32.mrb[0].mxu0
      %311 = vdwg.mxu0
      %v312 = vxor.u32 %v304, 2147483648
      %v313 = vxor.u32 %v309, 2147483648
      %v314 = vmul.f32 %v312, 1.442695
      %v315 = vpow.pop %v314
      %v316 = vmul.f32 %v313, 1.442695
      %v317 = vpow.pop %v316
      %v318 = vadd.f32 %v315, 1.0
      %v319 = vadd.f32 %v317, 1.0
      %v320 = vrcp.pop %v318
      %v321 = vmul.f32 1.0, %v320
      %v322 = vrcp.pop %v319
      %v323 = vmul.f32 1.0, %v322
      %v324 = vld [vmem:[#allocation2] sm:$0xff]
      %v325 = vld [vmem:[#allocation2 + $0x8] sm:$0xff]
      %v326 = vmul.f32 %v324, %v321
      %v327 = vmul.f32 %v325, %v323
      %v328 = vsel %vm45, %v326, 0.0
      %329 = vadd.xlane.f32.xlu0 %v328
      %v330 = vpop.xlane.xlu0 %329
      %v331 = vsel %vm45, %v327, 0.0
      %332 = vadd.xlane.f32.xlu0 %v331
      %v333 = vpop.xlane.xlu0 %332
      %v334 = vrcp.pop 32.0
      %v335 = vmul.f32 %v330, %v334
      %v336 = vmul.f32 %v333, %v334
      %v337 = vsub.f32 %v326, %v335
      %v338 = vsub.f32 %v327, %v336
      %v339 = vmul.f32 %v337, %v337
      %v340 = vmul.f32 %v338, %v338
      %v341 = vsel %vm45, %v339, 0.0
      %342 = vadd.xlane.f32.xlu0 %v341
      %v343 = vpop.xlane.xlu0 %342
      %v344 = vsel %vm45, %v340, 0.0
      %345 = vadd.xlane.f32.xlu0 %v344
      %v346 = vpop.xlane.xlu0 %345
      %v347 = vmul.f32 %v343, %v334
      %v348 = vmul.f32 %v346, %v334
      %v349 = vadd.f32 %v347, 1e-05
      %v350 = vadd.f32 %v348, 1e-05
      %v351 = vrsqrt.pop %v349
      %v352 = vrsqrt.pop %v350
      %v353 = vmul.f32 %v337, %v351
      %v354 = vmul.f32 %v338, %v352
      %v355 = vld [vmem:[%s5] sm:$0x1]
      %v357 = vlaneseq
      %v358 = vshrl.u32 %v357, 7
      %v359 = vsub.s32 0, %v358
      %v360 = vrot.slane %v355, %v359
      %v362 = vmul.f32 %v353, %v360
      %v363 = vmul.f32 %v354, %v360
      %v364 = vld [vmem:[%s6] sm:$0x1]
      %v366 = vlaneseq
      %v367 = vshrl.u32 %v366, 7
      %v368 = vsub.s32 0, %v367
      %v369 = vrot.slane %v364, %v368
      %v371 = vadd.f32 %v362, %v369
      %v372 = vadd.f32 %v363, %v369
      %373 = vst.msk [vmem:[#allocation4] sm:$0xff] %vm45, %v371
      %374 = vst.msk [vmem:[#allocation4 + $0x8] sm:$0xff] %vm45, %v372
    $region37: #{linear_attention_forward.9} parent=1 // pred_fallthru
      _
    // Predicated region
    $region38: #{linear_attention_forward.9} parent=1 // pred_check
      _
    $region39: #{linear_attention_forward.9} parent=1 // pred_check_branch
      %376 = sbr.rel (0) target = $region41
    $region40: #{linear_attention_forward.9} parent=1 // pred_region
      %s378 = ssub.s32 256, 256
      %379 = vsyncadd [#allocation5], %s378
      %s380 = sshll.u32 [#allocation4], 4
      %s381 = int_to_ptr.vmem [resolvable:$true] %s380
      %386 = dma.vmem_to_hbm [thread:$0]  %s381, 256, %s7, [#allocation5], 128, 128, 8
    $region41: #{linear_attention_forward.9} parent=1 // pred_fallthru
      _
    // Predicated region
    $region42: #{linear_attention_forward.9} parent=1 // pred_check
      _
    $region43: #{linear_attention_forward.9} parent=1 // pred_check_branch
      %388 = sbr.rel (0) target = $region45
    $region44: #{linear_attention_forward.9} parent=1 // pred_region
      %389 = dma.done [#allocation5], 256
    $region45: #{linear_attention_forward.9} parent=1 // pred_fallthru
      _
    %390 = vsyncpa [#allocation5], 1

</llo_original>
